<compile_context>
chip_gen: v6e
topology: v6e:2x2x1
jax: 0.10.0
libtpu: 0.0.40
codegen_flags: <defaults>
</compile_context>

<pallas_src>
import functools
import math

import jax
import jax.numpy as jnp
import jax.scipy.special as jss
from jax.experimental import pallas as pl
from jax.experimental.pallas import tpu as pltpu

_TINY = 1e-30


def _recip(x):
    """Reciprocal: one EUP vrcp (approx) + one Newton step on the VPU (slack)."""
    r = pl.reciprocal(x, approx=True)
    return r * (2.0 - x * r)


def _lentz_coeffs(a, b, order):
    """Compile-time scalar coefficients of the modified-Lentz CF for I_w(a,b).

    d0 = 1 + c0*w ;  even step m: aa = e[m]*w ;  odd step m: aa = o[m]*w.
    """
    c0 = -(a + b) / (a + 1.0)
    even, odd = [], []
    for m in range(1, order + 1):
        m2 = 2.0 * m
        even.append(m * (b - m) / ((a - 1.0 + m2) * (a + m2)))
        odd.append(-(a + m) * (a + b + m) / ((a + m2) * (a + 1.0 + m2)))
    return float(c0), tuple(float(v) for v in even), tuple(float(v) for v in odd)


def _betainc_filter_kernel(x_ref, o_ref, *, mode, p, q, s, ln_beta,
                           threshold, order, coeffs_pq, coeffs_qp):
    """Elementwise s * I_x(p, q) (+ optional threshold) on one VMEM tile."""
    x = x_ref[...].astype(jnp.float32)

    if mode == "identity":
        # p == q == 1:  I_x(1, 1) = clip(x, 0, 1)   (memory-bound copy+scale)
        ibeta = jnp.clip(x, 0.0, 1.0)
    elif mode == "pow_p":
        # q == 1:  I_x(p, 1) = x**p
        xc = jnp.clip(x, 0.0, 1.0)
        ibeta = jnp.where(xc > 0.0,
                          jnp.exp(p * jnp.log(jnp.maximum(xc, _TINY))), 0.0)
    elif mode == "pow_q":
        # p == 1:  I_x(1, q) = 1 - (1-x)**q
        u = 1.0 - jnp.clip(x, 0.0, 1.0)
        ibeta = 1.0 - jnp.where(u > 0.0,
                                jnp.exp(q * jnp.log(jnp.maximum(u, _TINY))), 0.0)
    else:  # "cf" -- fixed-order modified-Lentz continued fraction
        xo = jnp.clip(x, 1e-30, 1.0 - 1e-7)      # open interval for the logs
        one_minus = 1.0 - xo

        # Branch selector of the classic incomplete-beta CF (scalar split point).
        sel = x < (p + 1.0) / (p + q + 2.0)

        # Prefactor exp(p ln x + q ln(1-x) - ln B(p,q)); symmetric under the
        # (p, x) <-> (q, 1-x) swap so it is shared by both branches.
        front = jnp.exp(p * jnp.log(xo) + q * jnp.log(one_minus) - ln_beta)

        w = jnp.where(sel, xo, one_minus)

        c0_pq, even_pq, odd_pq = coeffs_pq
        c0_qp, even_qp, odd_qp = coeffs_qp

        def pick(u, v):
            # One vselect per coefficient (VALU has slack under the EUP-bound
            # regime); collapses to a compile-time immediate when p == q.
            return u if u == v else jnp.where(sel, u, v)

        def clamp(t):
            return jnp.where(jnp.abs(t) < _TINY, _TINY, t)

        c = jnp.ones_like(w)
        d = _recip(clamp(1.0 + pick(c0_pq, c0_qp) * w))
        h = d
        for m in range(order):
            aa = pick(even_pq[m], even_qp[m]) * w
            d = _recip(clamp(1.0 + aa * d))
            c = clamp(1.0 + aa * _recip(c))
            h = h * d * c
            aa = pick(odd_pq[m], odd_qp[m]) * w
            d = _recip(clamp(1.0 + aa * d))
            c = clamp(1.0 + aa * _recip(c))
            h = h * d * c

        i_direct = front * h * pick(1.0 / p, 1.0 / q)
        ibeta = jnp.where(sel, i_direct, 1.0 - i_direct)
        ibeta = jnp.where(x <= 0.0, 0.0, ibeta)
        ibeta = jnp.where(x >= 1.0, 1.0, ibeta)

    y = s * ibeta
    if threshold is not None:
        # TODO(synk): original ThresholdFilter thresholds in the tensor dtype;
        # here it is applied in f32 before the cast (identical for f32 inputs).
        y = jnp.where(jnp.abs(y) < threshold, 0.0, y)

    o_ref[...] = y.astype(o_ref.dtype)


def _default_block_bytes():
    """~1 MiB f32 tiles by default; 2 MiB where VMEM is plentiful (v5e/v6e)."""
    try:
        info = pltpu.get_tpu_info()
        if getattr(info, "vmem_capacity_bytes", 0) >= 96 * 1024 * 1024:
            return 2 << 20
    except Exception:
        pass
    return 1 << 20


def betainc_filter(x, *, log_p=0.0, log_q=0.0, log_scaling=0.0,
                   threshold=None, order=15, target_block_bytes=None):
    """Dense BetaincFilter forward (optionally followed by ThresholdFilter)."""
    p = math.exp(float(log_p))
    q = math.exp(float(log_q))
    s = math.exp(float(log_scaling))

    orig_shape = x.shape
    orig_dtype = x.dtype
    n = int(x.size)
    if n == 0:
        return x

    # Compile-time closed forms skip the 30-step continued fraction entirely.
    if abs(p - 1.0) < 1e-12 and abs(q - 1.0) < 1e-12:
        mode = "identity"
    elif abs(q - 1.0) < 1e-12:
        mode = "pow_p"
    elif abs(p - 1.0) < 1e-12:
        mode = "pow_q"
    else:
        mode = "cf"

    ln_beta = math.lgamma(p) + math.lgamma(q) - math.lgamma(p + q)
    coeffs_pq = _lentz_coeffs(p, q, int(order))
    coeffs_qp = _lentz_coeffs(q, p, int(order))

    # --- lane-dense (rows, cols) slab; zero-copy reshape whenever possible.
    cols = None
    for c in (1024, 512, 256, 128):
        if n % c == 0:
            cols = c
            break
    if cols is None:
        cols = 128
        rows = int(pl.cdiv(n, cols))
        pad = rows * cols - n
        flat = jnp.pad(x.reshape(-1), (0, pad), constant_values=0.5)  # in-domain filler
        needs_unpad = True
    else:
        rows = n // cols
        flat = x.reshape(-1)
        needs_unpad = False
    x2 = flat.reshape(rows, cols)

    # --- row tile from a VMEM budget (f32 compute itemsize, not input dtype).
    if target_block_bytes is None:
        target_block_bytes = _default_block_bytes()
    tile_rows = max(8, target_block_bytes // (cols * 4))
    if rows >= 32:
        # Keep >= 4 grid steps on large inputs so ("parallel",) can shard the
        # tiles across v7x's two TensorCores (no effect on v5e/v6e).
        tile_rows = min(tile_rows, max(8, ((rows // 4) // 8) * 8))
    tile_rows = min(tile_rows, rows)
    if rows > 8:
        tile_rows = max(8, (tile_rows // 8) * 8)
    grid = (int(pl.cdiv(rows, tile_rows)),)

    kernel = functools.partial(
        _betainc_filter_kernel,
        mode=mode, p=p, q=q, s=s, ln_beta=ln_beta,
        threshold=None if threshold is None else float(threshold),
        order=int(order), coeffs_pq=coeffs_pq, coeffs_qp=coeffs_qp)

    # Advisory cost: EUP ops are the real bottleneck for the CF path
    # (~4*order + 4 reciprocals/exp/log per element); VPU flops are filler.
    n_total = rows * cols
    if mode == "cf":
        flops_per = 16 * (2 * int(order) + 1) + 24
        trans_per = 4 * int(order) + 4
    elif mode == "identity":
        flops_per, trans_per = 4, 0
    else:
        flops_per, trans_per = 10, 2
    itemsize = jnp.dtype(orig_dtype).itemsize
    cost = pl.CostEstimate(
        flops=int(n_total) * flops_per,
        transcendentals=int(n_total) * trans_per,
        bytes_accessed=2 * int(n_total) * itemsize)

    tile_bytes_f32 = tile_rows * cols * 4
    vmem_limit = max(32 << 20, min(96 << 20, 20 * tile_bytes_f32))

    out2 = pl.pallas_call(
        kernel,
        out_shape=jax.ShapeDtypeStruct((rows, cols), orig_dtype),
        grid_spec=pltpu.PrefetchScalarGridSpec(
            num_scalar_prefetch=0,
            grid=grid,
            in_specs=[pl.BlockSpec((tile_rows, cols), lambda i: (i, 0))],
            out_specs=pl.BlockSpec((tile_rows, cols), lambda i: (i, 0)),
        ),
        compiler_params=pltpu.CompilerParams(
            dimension_semantics=("parallel",),
            vmem_limit_bytes=int(vmem_limit)),
        cost_estimate=cost,
    )(x2)

    out = out2.reshape(-1)
    if needs_unpad:
        out = out[:n]
    return out.reshape(orig_shape)


def betainc_filter_reference(x, *, log_p=0.0, log_q=0.0, log_scaling=0.0,
                             threshold=None):
    """Pure-JAX reference: s * betainc(p, q, x) (+ optional threshold)."""
    p = math.exp(float(log_p))
    q = math.exp(float(log_q))
    s = math.exp(float(log_scaling))
    xf = x.astype(jnp.float32)
    y = s * jss.betainc(p, q, jnp.clip(xf, 0.0, 1.0))
    if threshold is not None:
        y = jnp.where(jnp.abs(y) < float(threshold), 0.0, y)
    return y.astype(x.dtype)


if __name__ == "__main__":
    key = jax.random.PRNGKey(0)
    # Reachability-style input: batch of 2 series of 4 small 16x16 blocks,
    # values in [0, 1) (the domain of the regularized incomplete beta).
    x = jax.random.uniform(key, (2, 4, 16, 16), dtype=jnp.float32)

    log_p, log_q, log_scaling = 0.3, -0.2, 0.5
    # ThresholdFilter.create_from_graph_size(num_nodes=16, num_edges=32)
    threshold = 1.0 / math.sqrt((16 + 1) * (32 + 1))

    # General (continued-fraction) path vs jax.scipy betainc.
    out_plain = jax.block_until_ready(
        betainc_filter(x, log_p=log_p, log_q=log_q, log_scaling=log_scaling))
    ref_plain = betainc_filter_reference(
        x, log_p=log_p, log_q=log_q, log_scaling=log_scaling)
    assert out_plain.shape == x.shape and out_plain.dtype == x.dtype
    assert jnp.allclose(out_plain, ref_plain, atol=2e-4, rtol=2e-3), \
        "betainc mismatch vs jax.scipy reference"

    # BetaincFilter followed by ThresholdFilter.  Threshold the kernel's own
    # un-thresholded output so borderline |y| ~ threshold values cannot flip.
    out_thr = jax.block_until_ready(
        betainc_filter(x, log_p=log_p, log_q=log_q, log_scaling=log_scaling,
                       threshold=threshold))
    ref_thr = jnp.where(jnp.abs(out_plain) < threshold, 0.0, out_plain)
    assert jnp.allclose(out_thr, ref_thr, atol=1e-5, rtol=1e-5), \
        "threshold path mismatch"

    # Module defaults (log_p = log_q = log_scaling = 0): closed-form fast path,
    # betainc(x; 1, 1) == x.
    out_id = jax.block_until_ready(betainc_filter(x))
    assert jnp.allclose(out_id, x, atol=1e-6, rtol=1e-6), "identity case mismatch"

    # Closed-form q == 1 path: I_x(p, 1) = x**p.
    out_pow = jax.block_until_ready(betainc_filter(x, log_p=0.5, log_q=0.0))
    ref_pow = betainc_filter_reference(x, log_p=0.5, log_q=0.0)
    assert jnp.allclose(out_pow, ref_pow, atol=2e-4, rtol=2e-3), \
        "q == 1 closed-form mismatch"

    print("KERNEL_OK")
</pallas_src>

<mosaic_0001>
module attributes {stable_mosaic.version = 11 : i64} {
  func.func @_betainc_filter_kernel(%arg0: i32, %arg1: memref<2x1024xf32, #tpu.memory_space<vmem>>, %arg2: memref<2x1024xf32, #tpu.memory_space<vmem>>) attributes {dimension_semantics = [#tpu.dimension_semantics<parallel>], iteration_bounds = array<i64: 1>, scalar_prefetch = 0 : i64, scratch_operands = 0 : i64, tpu.core_type = #tpu.core_type<tc>, window_params = [{transform_indices = @transform_0, window_bounds = array<i64: 2, 1024>}, {transform_indices = @transform_1, window_bounds = array<i64: 2, 1024>}]} {
    %c0 = arith.constant 0 : index
    %c0_0 = arith.constant 0 : index
    %0 = vector.load %arg1[%c0, %c0_0] : memref<2x1024xf32, #tpu.memory_space<vmem>>, vector<2x1024xf32>
    %cst = arith.constant 1.000000e-30 : f32
    %cst_1 = arith.constant 0.99999988 : f32
    %1 = vector.broadcast %cst : f32 to vector<2x1024xf32>
    %2 = arith.maximumf %1, %0 : vector<2x1024xf32>
    %3 = vector.broadcast %cst_1 : f32 to vector<2x1024xf32>
    %4 = arith.minimumf %3, %2 : vector<2x1024xf32>
    %cst_2 = arith.constant 1.000000e+00 : f32
    %5 = vector.broadcast %cst_2 : f32 to vector<2x1024xf32>
    %6 = arith.subf %5, %4 : vector<2x1024xf32>
    %cst_3 = arith.constant 5.637060e-01 : f32
    %7 = vector.broadcast %cst_3 : f32 to vector<2x1024xf32>
    %8 = arith.cmpf olt, %0, %7 : vector<2x1024xf32>
    %9 = math.log %4 : vector<2x1024xf32>
    %cst_4 = arith.constant 1.34985876 : f32
    %10 = vector.broadcast %cst_4 : f32 to vector<2x1024xf32>
    %11 = arith.mulf %10, %9 : vector<2x1024xf32>
    %12 = math.log %6 : vector<2x1024xf32>
    %cst_5 = arith.constant 0.818730771 : f32
    %13 = vector.broadcast %cst_5 : f32 to vector<2x1024xf32>
    %14 = arith.mulf %13, %12 : vector<2x1024xf32>
    %15 = arith.addf %11, %14 : vector<2x1024xf32>
    %cst_6 = arith.constant -0.0609771311 : f32
    %16 = vector.broadcast %cst_6 : f32 to vector<2x1024xf32>
    %17 = arith.subf %15, %16 : vector<2x1024xf32>
    %18 = math.exp %17 : vector<2x1024xf32>
    %19 = arith.select %8, %4, %6 : vector<2x1024xi1>, vector<2x1024xf32>
    %cst_7 = arith.constant 1.000000e+00 : f32
    %20 = vector.broadcast %cst_7 : f32 to vector<2x1024xf32>
    %cst_8 = arith.constant -0.922859489 : f32
    %cst_9 = arith.constant -1.19236422 : f32
    %21 = vector.broadcast %cst_8 : f32 to vector<2x1024xf32>
    %22 = vector.broadcast %cst_9 : f32 to vector<2x1024xf32>
    %23 = arith.select %8, %21, %22 : vector<2x1024xi1>, vector<2x1024xf32>
    %24 = arith.mulf %23, %19 : vector<2x1024xf32>
    %cst_10 = arith.constant 1.000000e+00 : f32
    %25 = vector.broadcast %cst_10 : f32 to vector<2x1024xf32>
    %26 = arith.addf %25, %24 : vector<2x1024xf32>
    %27 = math.absf %26 : vector<2x1024xf32>
    %cst_11 = arith.constant 1.000000e-30 : f32
    %28 = vector.broadcast %cst_11 : f32 to vector<2x1024xf32>
    %29 = arith.cmpf olt, %27, %28 : vector<2x1024xf32>
    %cst_12 = arith.constant 1.000000e-30 : f32
    %30 = vector.broadcast %cst_12 : f32 to vector<2x1024xf32>
    %31 = arith.select %29, %30, %26 : vector<2x1024xi1>, vector<2x1024xf32>
    %32 = tpu.reciprocal %31 {approx = true} : vector<2x1024xf32> -> vector<2x1024xf32>
    %33 = arith.mulf %31, %32 : vector<2x1024xf32>
    %cst_13 = arith.constant 2.000000e+00 : f32
    %34 = vector.broadcast %cst_13 : f32 to vector<2x1024xf32>
    %35 = arith.subf %34, %33 : vector<2x1024xf32>
    %36 = arith.mulf %32, %35 : vector<2x1024xf32>
    %cst_14 = arith.constant -0.0230279807 : f32
    %cst_15 = arith.constant 0.0682449937 : f32
    %37 = vector.broadcast %cst_14 : f32 to vector<2x1024xf32>
    %38 = vector.broadcast %cst_15 : f32 to vector<2x1024xf32>
    %39 = arith.select %8, %37, %38 : vector<2x1024xi1>, vector<2x1024xf32>
    %40 = arith.mulf %39, %19 : vector<2x1024xf32>
    %41 = arith.mulf %40, %36 : vector<2x1024xf32>
    %cst_16 = arith.constant 1.000000e+00 : f32
    %42 = vector.broadcast %cst_16 : f32 to vector<2x1024xf32>
    %43 = arith.addf %42, %41 : vector<2x1024xf32>
    %44 = math.absf %43 : vector<2x1024xf32>
    %cst_17 = arith.constant 1.000000e-30 : f32
    %45 = vector.broadcast %cst_17 : f32 to vector<2x1024xf32>
    %46 = arith.cmpf olt, %44, %45 : vector<2x1024xf32>
    %cst_18 = arith.constant 1.000000e-30 : f32
    %47 = vector.broadcast %cst_18 : f32 to vector<2x1024xf32>
    %48 = arith.select %46, %47, %43 : vector<2x1024xi1>, vector<2x1024xf32>
    %49 = tpu.reciprocal %48 {approx = true} : vector<2x1024xf32> -> vector<2x1024xf32>
    %50 = arith.mulf %48, %49 : vector<2x1024xf32>
    %cst_19 = arith.constant 2.000000e+00 : f32
    %51 = vector.broadcast %cst_19 : f32 to vector<2x1024xf32>
    %52 = arith.subf %51, %50 : vector<2x1024xf32>
    %53 = arith.mulf %49, %52 : vector<2x1024xf32>
    %54 = tpu.reciprocal %20 {approx = true} : vector<2x1024xf32> -> vector<2x1024xf32>
    %55 = arith.mulf %20, %54 : vector<2x1024xf32>
    %cst_20 = arith.constant 2.000000e+00 : f32
    %56 = vector.broadcast %cst_20 : f32 to vector<2x1024xf32>
    %57 = arith.subf %56, %55 : vector<2x1024xf32>
    %58 = arith.mulf %54, %57 : vector<2x1024xf32>
    %59 = arith.mulf %40, %58 : vector<2x1024xf32>
    %cst_21 = arith.constant 1.000000e+00 : f32
    %60 = vector.broadcast %cst_21 : f32 to vector<2x1024xf32>
    %61 = arith.addf %60, %59 : vector<2x1024xf32>
    %62 = math.absf %61 : vector<2x1024xf32>
    %cst_22 = arith.constant 1.000000e-30 : f32
    %63 = vector.broadcast %cst_22 : f32 to vector<2x1024xf32>
    %64 = arith.cmpf olt, %62, %63 : vector<2x1024xf32>
    %cst_23 = arith.constant 1.000000e-30 : f32
    %65 = vector.broadcast %cst_23 : f32 to vector<2x1024xf32>
    %66 = arith.select %64, %65, %61 : vector<2x1024xi1>, vector<2x1024xf32>
    %67 = arith.mulf %36, %53 : vector<2x1024xf32>
    %68 = arith.mulf %67, %66 : vector<2x1024xf32>
    %cst_24 = arith.constant -0.510982573 : f32
    %cst_25 = arith.constant -0.535379529 : f32
    %69 = vector.broadcast %cst_24 : f32 to vector<2x1024xf32>
    %70 = vector.broadcast %cst_25 : f32 to vector<2x1024xf32>
    %71 = arith.select %8, %69, %70 : vector<2x1024xi1>, vector<2x1024xf32>
    %72 = arith.mulf %71, %19 : vector<2x1024xf32>
    %73 = arith.mulf %72, %53 : vector<2x1024xf32>
    %cst_26 = arith.constant 1.000000e+00 : f32
    %74 = vector.broadcast %cst_26 : f32 to vector<2x1024xf32>
    %75 = arith.addf %74, %73 : vector<2x1024xf32>
    %76 = math.absf %75 : vector<2x1024xf32>
    %cst_27 = arith.constant 1.000000e-30 : f32
    %77 = vector.broadcast %cst_27 : f32 to vector<2x1024xf32>
    %78 = arith.cmpf olt, %76, %77 : vector<2x1024xf32>
    %cst_28 = arith.constant 1.000000e-30 : f32
    %79 = vector.broadcast %cst_28 : f32 to vector<2x1024xf32>
    %80 = arith.select %78, %79, %75 : vector<2x1024xi1>, vector<2x1024xf32>
    %81 = tpu.reciprocal %80 {approx = true} : vector<2x1024xf32> -> vector<2x1024xf32>
    %82 = arith.mulf %80, %81 : vector<2x1024xf32>
    %cst_29 = arith.constant 2.000000e+00 : f32
    %83 = vector.broadcast %cst_29 : f32 to vector<2x1024xf32>
    %84 = arith.subf %83, %82 : vector<2x1024xf32>
    %85 = arith.mulf %81, %84 : vector<2x1024xf32>
    %86 = tpu.reciprocal %66 {approx = true} : vector<2x1024xf32> -> vector<2x1024xf32>
    %87 = arith.mulf %66, %86 : vector<2x1024xf32>
    %cst_30 = arith.constant 2.000000e+00 : f32
    %88 = vector.broadcast %cst_30 : f32 to vector<2x1024xf32>
    %89 = arith.subf %88, %87 : vector<2x1024xf32>
    %90 = arith.mulf %86, %89 : vector<2x1024xf32>
    %91 = arith.mulf %72, %90 : vector<2x1024xf32>
    %cst_31 = arith.constant 1.000000e+00 : f32
    %92 = vector.broadcast %cst_31 : f32 to vector<2x1024xf32>
    %93 = arith.addf %92, %91 : vector<2x1024xf32>
    %94 = math.absf %93 : vector<2x1024xf32>
    %cst_32 = arith.constant 1.000000e-30 : f32
    %95 = vector.broadcast %cst_32 : f32 to vector<2x1024xf32>
    %96 = arith.cmpf olt, %94, %95 : vector<2x1024xf32>
    %cst_33 = arith.constant 1.000000e-30 : f32
    %97 = vector.broadcast %cst_33 : f32 to vector<2x1024xf32>
    %98 = arith.select %96, %97, %93 : vector<2x1024xi1>, vector<2x1024xf32>
    %99 = arith.mulf %68, %85 : vector<2x1024xf32>
    %100 = arith.mulf %99, %98 : vector<2x1024xf32>
    %cst_34 = arith.constant -0.101522289 : f32
    %cst_35 = arith.constant -0.0706620067 : f32
    %101 = vector.broadcast %cst_34 : f32 to vector<2x1024xf32>
    %102 = vector.broadcast %cst_35 : f32 to vector<2x1024xf32>
    %103 = arith.select %8, %101, %102 : vector<2x1024xi1>, vector<2x1024xf32>
    %104 = arith.mulf %103, %19 : vector<2x1024xf32>
    %105 = arith.mulf %104, %85 : vector<2x1024xf32>
    %cst_36 = arith.constant 1.000000e+00 : f32
    %106 = vector.broadcast %cst_36 : f32 to vector<2x1024xf32>
    %107 = arith.addf %106, %105 : vector<2x1024xf32>
    %108 = math.absf %107 : vector<2x1024xf32>
    %cst_37 = arith.constant 1.000000e-30 : f32
    %109 = vector.broadcast %cst_37 : f32 to vector<2x1024xf32>
    %110 = arith.cmpf olt, %108, %109 : vector<2x1024xf32>
    %cst_38 = arith.constant 1.000000e-30 : f32
    %111 = vector.broadcast %cst_38 : f32 to vector<2x1024xf32>
    %112 = arith.select %110, %111, %107 : vector<2x1024xi1>, vector<2x1024xf32>
    %113 = tpu.reciprocal %112 {approx = true} : vector<2x1024xf32> -> vector<2x1024xf32>
    %114 = arith.mulf %112, %113 : vector<2x1024xf32>
    %cst_39 = arith.constant 2.000000e+00 : f32
    %115 = vector.broadcast %cst_39 : f32 to vector<2x1024xf32>
    %116 = arith.subf %115, %114 : vector<2x1024xf32>
    %117 = arith.mulf %113, %116 : vector<2x1024xf32>
    %118 = tpu.reciprocal %98 {approx = true} : vector<2x1024xf32> -> vector<2x1024xf32>
    %119 = arith.mulf %98, %118 : vector<2x1024xf32>
    %cst_40 = arith.constant 2.000000e+00 : f32
    %120 = vector.broadcast %cst_40 : f32 to vector<2x1024xf32>
    %121 = arith.subf %120, %119 : vector<2x1024xf32>
    %122 = arith.mulf %118, %121 : vector<2x1024xf32>
    %123 = arith.mulf %104, %122 : vector<2x1024xf32>
    %cst_41 = arith.constant 1.000000e+00 : f32
    %124 = vector.broadcast %cst_41 : f32 to vector<2x1024xf32>
    %125 = arith.addf %124, %123 : vector<2x1024xf32>
    %126 = math.absf %125 : vector<2x1024xf32>
    %cst_42 = arith.constant 1.000000e-30 : f32
    %127 = vector.broadcast %cst_42 : f32 to vector<2x1024xf32>
    %128 = arith.cmpf olt, %126, %127 : vector<2x1024xf32>
    %cst_43 = arith.constant 1.000000e-30 : f32
    %129 = vector.broadcast %cst_43 : f32 to vector<2x1024xf32>
    %130 = arith.select %128, %129, %125 : vector<2x1024xi1>, vector<2x1024xf32>
    %131 = arith.mulf %100, %117 : vector<2x1024xf32>
    %132 = arith.mulf %131, %130 : vector<2x1024xf32>
    %cst_44 = arith.constant -0.41106382 : f32
    %cst_45 = arith.constant -0.419065416 : f32
    %133 = vector.broadcast %cst_44 : f32 to vector<2x1024xf32>
    %134 = vector.broadcast %cst_45 : f32 to vector<2x1024xf32>
    %135 = arith.select %8, %133, %134 : vector<2x1024xi1>, vector<2x1024xf32>
    %136 = arith.mulf %135, %19 : vector<2x1024xf32>
    %137 = arith.mulf %136, %117 : vector<2x1024xf32>
    %cst_46 = arith.constant 1.000000e+00 : f32
    %138 = vector.broadcast %cst_46 : f32 to vector<2x1024xf32>
    %139 = arith.addf %138, %137 : vector<2x1024xf32>
    %140 = math.absf %139 : vector<2x1024xf32>
    %cst_47 = arith.constant 1.000000e-30 : f32
    %141 = vector.broadcast %cst_47 : f32 to vector<2x1024xf32>
    %142 = arith.cmpf olt, %140, %141 : vector<2x1024xf32>
    %cst_48 = arith.constant 1.000000e-30 : f32
    %143 = vector.broadcast %cst_48 : f32 to vector<2x1024xf32>
    %144 = arith.select %142, %143, %139 : vector<2x1024xi1>, vector<2x1024xf32>
    %145 = tpu.reciprocal %144 {approx = true} : vector<2x1024xf32> -> vector<2x1024xf32>
    %146 = arith.mulf %144, %145 : vector<2x1024xf32>
    %cst_49 = arith.constant 2.000000e+00 : f32
    %147 = vector.broadcast %cst_49 : f32 to vector<2x1024xf32>
    %148 = arith.subf %147, %146 : vector<2x1024xf32>
    %149 = arith.mulf %145, %148 : vector<2x1024xf32>
    %150 = tpu.reciprocal %130 {approx = true} : vector<2x1024xf32> -> vector<2x1024xf32>
    %151 = arith.mulf %130, %150 : vector<2x1024xf32>
    %cst_50 = arith.constant 2.000000e+00 : f32
    %152 = vector.broadcast %cst_50 : f32 to vector<2x1024xf32>
    %153 = arith.subf %152, %151 : vector<2x1024xf32>
    %154 = arith.mulf %150, %153 : vector<2x1024xf32>
    %155 = arith.mulf %136, %154 : vector<2x1024xf32>
    %cst_51 = arith.constant 1.000000e+00 : f32
    %156 = vector.broadcast %cst_51 : f32 to vector<2x1024xf32>
    %157 = arith.addf %156, %155 : vector<2x1024xf32>
    %158 = math.absf %157 : vector<2x1024xf32>
    %cst_52 = arith.constant 1.000000e-30 : f32
    %159 = vector.broadcast %cst_52 : f32 to vector<2x1024xf32>
    %160 = arith.cmpf olt, %158, %159 : vector<2x1024xf32>
    %cst_53 = arith.constant 1.000000e-30 : f32
    %161 = vector.broadcast %cst_53 : f32 to vector<2x1024xf32>
    %162 = arith.select %160, %161, %157 : vector<2x1024xi1>, vector<2x1024xf32>
    %163 = arith.mulf %132, %149 : vector<2x1024xf32>
    %164 = arith.mulf %163, %162 : vector<2x1024xf32>
    %cst_54 = arith.constant -0.14021273 : f32
    %cst_55 = arith.constant -0.124770112 : f32
    %165 = vector.broadcast %cst_54 : f32 to vector<2x1024xf32>
    %166 = vector.broadcast %cst_55 : f32 to vector<2x1024xf32>
    %167 = arith.select %8, %165, %166 : vector<2x1024xi1>, vector<2x1024xf32>
    %168 = arith.mulf %167, %19 : vector<2x1024xf32>
    %169 = arith.mulf %168, %149 : vector<2x1024xf32>
    %cst_56 = arith.constant 1.000000e+00 : f32
    %170 = vector.broadcast %cst_56 : f32 to vector<2x1024xf32>
    %171 = arith.addf %170, %169 : vector<2x1024xf32>
    %172 = math.absf %171 : vector<2x1024xf32>
    %cst_57 = arith.constant 1.000000e-30 : f32
    %173 = vector.broadcast %cst_57 : f32 to vector<2x1024xf32>
    %174 = arith.cmpf olt, %172, %173 : vector<2x1024xf32>
    %cst_58 = arith.constant 1.000000e-30 : f32
    %175 = vector.broadcast %cst_58 : f32 to vector<2x1024xf32>
    %176 = arith.select %174, %175, %171 : vector<2x1024xi1>, vector<2x1024xf32>
    %177 = tpu.reciprocal %176 {approx = true} : vector<2x1024xf32> -> vector<2x1024xf32>
    %178 = arith.mulf %176, %177 : vector<2x1024xf32>
    %cst_59 = arith.constant 2.000000e+00 : f32
    %179 = vector.broadcast %cst_59 : f32 to vector<2x1024xf32>
    %180 = arith.subf %179, %178 : vector<2x1024xf32>
    %181 = arith.mulf %177, %180 : vector<2x1024xf32>
    %182 = tpu.reciprocal %162 {approx = true} : vector<2x1024xf32> -> vector<2x1024xf32>
    %183 = arith.mulf %162, %182 : vector<2x1024xf32>
    %cst_60 = arith.constant 2.000000e+00 : f32
    %184 = vector.broadcast %cst_60 : f32 to vector<2x1024xf32>
    %185 = arith.subf %184, %183 : vector<2x1024xf32>
    %186 = arith.mulf %182, %185 : vector<2x1024xf32>
    %187 = arith.mulf %168, %186 : vector<2x1024xf32>
    %cst_61 = arith.constant 1.000000e+00 : f32
    %188 = vector.broadcast %cst_61 : f32 to vector<2x1024xf32>
    %189 = arith.addf %188, %187 : vector<2x1024xf32>
    %190 = math.absf %189 : vector<2x1024xf32>
    %cst_62 = arith.constant 1.000000e-30 : f32
    %191 = vector.broadcast %cst_62 : f32 to vector<2x1024xf32>
    %192 = arith.cmpf olt, %190, %191 : vector<2x1024xf32>
    %cst_63 = arith.constant 1.000000e-30 : f32
    %193 = vector.broadcast %cst_63 : f32 to vector<2x1024xf32>
    %194 = arith.select %192, %193, %189 : vector<2x1024xi1>, vector<2x1024xf32>
    %195 = arith.mulf %164, %181 : vector<2x1024xf32>
    %196 = arith.mulf %195, %194 : vector<2x1024xf32>
    %cst_64 = arith.constant -3.663440e-01 : f32
    %cst_65 = arith.constant -0.370212674 : f32
    %197 = vector.broadcast %cst_64 : f32 to vector<2x1024xf32>
    %198 = vector.broadcast %cst_65 : f32 to vector<2x1024xf32>
    %199 = arith.select %8, %197, %198 : vector<2x1024xi1>, vector<2x1024xf32>
    %200 = arith.mulf %199, %19 : vector<2x1024xf32>
    %201 = arith.mulf %200, %181 : vector<2x1024xf32>
    %cst_66 = arith.constant 1.000000e+00 : f32
    %202 = vector.broadcast %cst_66 : f32 to vector<2x1024xf32>
    %203 = arith.addf %202, %201 : vector<2x1024xf32>
    %204 = math.absf %203 : vector<2x1024xf32>
    %cst_67 = arith.constant 1.000000e-30 : f32
    %205 = vector.broadcast %cst_67 : f32 to vector<2x1024xf32>
    %206 = arith.cmpf olt, %204, %205 : vector<2x1024xf32>
    %cst_68 = arith.constant 1.000000e-30 : f32
    %207 = vector.broadcast %cst_68 : f32 to vector<2x1024xf32>
    %208 = arith.select %206, %207, %203 : vector<2x1024xi1>, vector<2x1024xf32>
    %209 = tpu.reciprocal %208 {approx = true} : vector<2x1024xf32> -> vector<2x1024xf32>
    %210 = arith.mulf %208, %209 : vector<2x1024xf32>
    %cst_69 = arith.constant 2.000000e+00 : f32
    %211 = vector.broadcast %cst_69 : f32 to vector<2x1024xf32>
    %212 = arith.subf %211, %210 : vector<2x1024xf32>
    %213 = arith.mulf %209, %212 : vector<2x1024xf32>
    %214 = tpu.reciprocal %194 {approx = true} : vector<2x1024xf32> -> vector<2x1024xf32>
    %215 = arith.mulf %194, %214 : vector<2x1024xf32>
    %cst_70 = arith.constant 2.000000e+00 : f32
    %216 = vector.broadcast %cst_70 : f32 to vector<2x1024xf32>
    %217 = arith.subf %216, %215 : vector<2x1024xf32>
    %218 = arith.mulf %214, %217 : vector<2x1024xf32>
    %219 = arith.mulf %200, %218 : vector<2x1024xf32>
    %cst_71 = arith.constant 1.000000e+00 : f32
    %220 = vector.broadcast %cst_71 : f32 to vector<2x1024xf32>
    %221 = arith.addf %220, %219 : vector<2x1024xf32>
    %222 = math.absf %221 : vector<2x1024xf32>
    %cst_72 = arith.constant 1.000000e-30 : f32
    %223 = vector.broadcast %cst_72 : f32 to vector<2x1024xf32>
    %224 = arith.cmpf olt, %222, %223 : vector<2x1024xf32>
    %cst_73 = arith.constant 1.000000e-30 : f32
    %225 = vector.broadcast %cst_73 : f32 to vector<2x1024xf32>
    %226 = arith.select %224, %225, %221 : vector<2x1024xi1>, vector<2x1024xf32>
    %227 = arith.mulf %196, %213 : vector<2x1024xf32>
    %228 = arith.mulf %227, %226 : vector<2x1024xf32>
    %cst_74 = arith.constant -0.162995726 : f32
    %cst_75 = arith.constant -0.153739929 : f32
    %229 = vector.broadcast %cst_74 : f32 to vector<2x1024xf32>
    %230 = vector.broadcast %cst_75 : f32 to vector<2x1024xf32>
    %231 = arith.select %8, %229, %230 : vector<2x1024xi1>, vector<2x1024xf32>
    %232 = arith.mulf %231, %19 : vector<2x1024xf32>
    %233 = arith.mulf %232, %213 : vector<2x1024xf32>
    %cst_76 = arith.constant 1.000000e+00 : f32
    %234 = vector.broadcast %cst_76 : f32 to vector<2x1024xf32>
    %235 = arith.addf %234, %233 : vector<2x1024xf32>
    %236 = math.absf %235 : vector<2x1024xf32>
    %cst_77 = arith.constant 1.000000e-30 : f32
    %237 = vector.broadcast %cst_77 : f32 to vector<2x1024xf32>
    %238 = arith.cmpf olt, %236, %237 : vector<2x1024xf32>
    %cst_78 = arith.constant 1.000000e-30 : f32
    %239 = vector.broadcast %cst_78 : f32 to vector<2x1024xf32>
    %240 = arith.select %238, %239, %235 : vector<2x1024xi1>, vector<2x1024xf32>
    %241 = tpu.reciprocal %240 {approx = true} : vector<2x1024xf32> -> vector<2x1024xf32>
    %242 = arith.mulf %240, %241 : vector<2x1024xf32>
    %cst_79 = arith.constant 2.000000e+00 : f32
    %243 = vector.broadcast %cst_79 : f32 to vector<2x1024xf32>
    %244 = arith.subf %243, %242 : vector<2x1024xf32>
    %245 = arith.mulf %241, %244 : vector<2x1024xf32>
    %246 = tpu.reciprocal %226 {approx = true} : vector<2x1024xf32> -> vector<2x1024xf32>
    %247 = arith.mulf %226, %246 : vector<2x1024xf32>
    %cst_80 = arith.constant 2.000000e+00 : f32
    %248 = vector.broadcast %cst_80 : f32 to vector<2x1024xf32>
    %249 = arith.subf %248, %247 : vector<2x1024xf32>
    %250 = arith.mulf %246, %249 : vector<2x1024xf32>
    %251 = arith.mulf %232, %250 : vector<2x1024xf32>
    %cst_81 = arith.constant 1.000000e+00 : f32
    %252 = vector.broadcast %cst_81 : f32 to vector<2x1024xf32>
    %253 = arith.addf %252, %251 : vector<2x1024xf32>
    %254 = math.absf %253 : vector<2x1024xf32>
    %cst_82 = arith.constant 1.000000e-30 : f32
    %255 = vector.broadcast %cst_82 : f32 to vector<2x1024xf32>
    %256 = arith.cmpf olt, %254, %255 : vector<2x1024xf32>
    %cst_83 = arith.constant 1.000000e-30 : f32
    %257 = vector.broadcast %cst_83 : f32 to vector<2x1024xf32>
    %258 = arith.select %256, %257, %253 : vector<2x1024xi1>, vector<2x1024xf32>
    %259 = arith.mulf %228, %245 : vector<2x1024xf32>
    %260 = arith.mulf %259, %258 : vector<2x1024xf32>
    %cst_84 = arith.constant -0.341026962 : f32
    %cst_85 = arith.constant -0.343286783 : f32
    %261 = vector.broadcast %cst_84 : f32 to vector<2x1024xf32>
    %262 = vector.broadcast %cst_85 : f32 to vector<2x1024xf32>
    %263 = arith.select %8, %261, %262 : vector<2x1024xi1>, vector<2x1024xf32>
    %264 = arith.mulf %263, %19 : vector<2x1024xf32>
    %265 = arith.mulf %264, %245 : vector<2x1024xf32>
    %cst_86 = arith.constant 1.000000e+00 : f32
    %266 = vector.broadcast %cst_86 : f32 to vector<2x1024xf32>
    %267 = arith.addf %266, %265 : vector<2x1024xf32>
    %268 = math.absf %267 : vector<2x1024xf32>
    %cst_87 = arith.constant 1.000000e-30 : f32
    %269 = vector.broadcast %cst_87 : f32 to vector<2x1024xf32>
    %270 = arith.cmpf olt, %268, %269 : vector<2x1024xf32>
    %cst_88 = arith.constant 1.000000e-30 : f32
    %271 = vector.broadcast %cst_88 : f32 to vector<2x1024xf32>
    %272 = arith.select %270, %271, %267 : vector<2x1024xi1>, vector<2x1024xf32>
    %273 = tpu.reciprocal %272 {approx = true} : vector<2x1024xf32> -> vector<2x1024xf32>
    %274 = arith.mulf %272, %273 : vector<2x1024xf32>
    %cst_89 = arith.constant 2.000000e+00 : f32
    %275 = vector.broadcast %cst_89 : f32 to vector<2x1024xf32>
    %276 = arith.subf %275, %274 : vector<2x1024xf32>
    %277 = arith.mulf %273, %276 : vector<2x1024xf32>
    %278 = tpu.reciprocal %258 {approx = true} : vector<2x1024xf32> -> vector<2x1024xf32>
    %279 = arith.mulf %258, %278 : vector<2x1024xf32>
    %cst_90 = arith.constant 2.000000e+00 : f32
    %280 = vector.broadcast %cst_90 : f32 to vector<2x1024xf32>
    %281 = arith.subf %280, %279 : vector<2x1024xf32>
    %282 = arith.mulf %278, %281 : vector<2x1024xf32>
    %283 = arith.mulf %264, %282 : vector<2x1024xf32>
    %cst_91 = arith.constant 1.000000e+00 : f32
    %284 = vector.broadcast %cst_91 : f32 to vector<2x1024xf32>
    %285 = arith.addf %284, %283 : vector<2x1024xf32>
    %286 = math.absf %285 : vector<2x1024xf32>
    %cst_92 = arith.constant 1.000000e-30 : f32
    %287 = vector.broadcast %cst_92 : f32 to vector<2x1024xf32>
    %288 = arith.cmpf olt, %286, %287 : vector<2x1024xf32>
    %cst_93 = arith.constant 1.000000e-30 : f32
    %289 = vector.broadcast %cst_93 : f32 to vector<2x1024xf32>
    %290 = arith.select %288, %289, %285 : vector<2x1024xi1>, vector<2x1024xf32>
    %291 = arith.mulf %260, %277 : vector<2x1024xf32>
    %292 = arith.mulf %291, %290 : vector<2x1024xf32>
    %cst_94 = arith.constant -0.177972645 : f32
    %cst_95 = arith.constant -0.171809822 : f32
    %293 = vector.broadcast %cst_94 : f32 to vector<2x1024xf32>
    %294 = vector.broadcast %cst_95 : f32 to vector<2x1024xf32>
    %295 = arith.select %8, %293, %294 : vector<2x1024xi1>, vector<2x1024xf32>
    %296 = arith.mulf %295, %19 : vector<2x1024xf32>
    %297 = arith.mulf %296, %277 : vector<2x1024xf32>
    %cst_96 = arith.constant 1.000000e+00 : f32
    %298 = vector.broadcast %cst_96 : f32 to vector<2x1024xf32>
    %299 = arith.addf %298, %297 : vector<2x1024xf32>
    %300 = math.absf %299 : vector<2x1024xf32>
    %cst_97 = arith.constant 1.000000e-30 : f32
    %301 = vector.broadcast %cst_97 : f32 to vector<2x1024xf32>
    %302 = arith.cmpf olt, %300, %301 : vector<2x1024xf32>
    %cst_98 = arith.constant 1.000000e-30 : f32
    %303 = vector.broadcast %cst_98 : f32 to vector<2x1024xf32>
    %304 = arith.select %302, %303, %299 : vector<2x1024xi1>, vector<2x1024xf32>
    %305 = tpu.reciprocal %304 {approx = true} : vector<2x1024xf32> -> vector<2x1024xf32>
    %306 = arith.mulf %304, %305 : vector<2x1024xf32>
    %cst_99 = arith.constant 2.000000e+00 : f32
    %307 = vector.broadcast %cst_99 : f32 to vector<2x1024xf32>
    %308 = arith.subf %307, %306 : vector<2x1024xf32>
    %309 = arith.mulf %305, %308 : vector<2x1024xf32>
    %310 = tpu.reciprocal %290 {approx = true} : vector<2x1024xf32> -> vector<2x1024xf32>
    %311 = arith.mulf %290, %310 : vector<2x1024xf32>
    %cst_100 = arith.constant 2.000000e+00 : f32
    %312 = vector.broadcast %cst_100 : f32 to vector<2x1024xf32>
    %313 = arith.subf %312, %311 : vector<2x1024xf32>
    %314 = arith.mulf %310, %313 : vector<2x1024xf32>
    %315 = arith.mulf %296, %314 : vector<2x1024xf32>
    %cst_101 = arith.constant 1.000000e+00 : f32
    %316 = vector.broadcast %cst_101 : f32 to vector<2x1024xf32>
    %317 = arith.addf %316, %315 : vector<2x1024xf32>
    %318 = math.absf %317 : vector<2x1024xf32>
    %cst_102 = arith.constant 1.000000e-30 : f32
    %319 = vector.broadcast %cst_102 : f32 to vector<2x1024xf32>
    %320 = arith.cmpf olt, %318, %319 : vector<2x1024xf32>
    %cst_103 = arith.constant 1.000000e-30 : f32
    %321 = vector.broadcast %cst_103 : f32 to vector<2x1024xf32>
    %322 = arith.select %320, %321, %317 : vector<2x1024xi1>, vector<2x1024xf32>
    %323 = arith.mulf %292, %309 : vector<2x1024xf32>
    %324 = arith.mulf %323, %322 : vector<2x1024xf32>
    %cst_104 = arith.constant -0.324747145 : f32
    %cst_105 = arith.constant -0.326223195 : f32
    %325 = vector.broadcast %cst_104 : f32 to vector<2x1024xf32>
    %326 = vector.broadcast %cst_105 : f32 to vector<2x1024xf32>
    %327 = arith.select %8, %325, %326 : vector<2x1024xi1>, vector<2x1024xf32>
    %328 = arith.mulf %327, %19 : vector<2x1024xf32>
    %329 = arith.mulf %328, %309 : vector<2x1024xf32>
    %cst_106 = arith.constant 1.000000e+00 : f32
    %330 = vector.broadcast %cst_106 : f32 to vector<2x1024xf32>
    %331 = arith.addf %330, %329 : vector<2x1024xf32>
    %332 = math.absf %331 : vector<2x1024xf32>
    %cst_107 = arith.constant 1.000000e-30 : f32
    %333 = vector.broadcast %cst_107 : f32 to vector<2x1024xf32>
    %334 = arith.cmpf olt, %332, %333 : vector<2x1024xf32>
    %cst_108 = arith.constant 1.000000e-30 : f32
    %335 = vector.broadcast %cst_108 : f32 to vector<2x1024xf32>
    %336 = arith.select %334, %335, %331 : vector<2x1024xi1>, vector<2x1024xf32>
    %337 = tpu.reciprocal %336 {approx = true} : vector<2x1024xf32> -> vector<2x1024xf32>
    %338 = arith.mulf %336, %337 : vector<2x1024xf32>
    %cst_109 = arith.constant 2.000000e+00 : f32
    %339 = vector.broadcast %cst_109 : f32 to vector<2x1024xf32>
    %340 = arith.subf %339, %338 : vector<2x1024xf32>
    %341 = arith.mulf %337, %340 : vector<2x1024xf32>
    %342 = tpu.reciprocal %322 {approx = true} : vector<2x1024xf32> -> vector<2x1024xf32>
    %343 = arith.mulf %322, %342 : vector<2x1024xf32>
    %cst_110 = arith.constant 2.000000e+00 : f32
    %344 = vector.broadcast %cst_110 : f32 to vector<2x1024xf32>
    %345 = arith.subf %344, %343 : vector<2x1024xf32>
    %346 = arith.mulf %342, %345 : vector<2x1024xf32>
    %347 = arith.mulf %328, %346 : vector<2x1024xf32>
    %cst_111 = arith.constant 1.000000e+00 : f32
    %348 = vector.broadcast %cst_111 : f32 to vector<2x1024xf32>
    %349 = arith.addf %348, %347 : vector<2x1024xf32>
    %350 = math.absf %349 : vector<2x1024xf32>
    %cst_112 = arith.constant 1.000000e-30 : f32
    %351 = vector.broadcast %cst_112 : f32 to vector<2x1024xf32>
    %352 = arith.cmpf olt, %350, %351 : vector<2x1024xf32>
    %cst_113 = arith.constant 1.000000e-30 : f32
    %353 = vector.broadcast %cst_113 : f32 to vector<2x1024xf32>
    %354 = arith.select %352, %353, %349 : vector<2x1024xi1>, vector<2x1024xf32>
    %355 = arith.mulf %324, %341 : vector<2x1024xf32>
    %356 = arith.mulf %355, %354 : vector<2x1024xf32>
    %cst_114 = arith.constant -0.188559636 : f32
    %cst_115 = arith.constant -0.184162632 : f32
    %357 = vector.broadcast %cst_114 : f32 to vector<2x1024xf32>
    %358 = vector.broadcast %cst_115 : f32 to vector<2x1024xf32>
    %359 = arith.select %8, %357, %358 : vector<2x1024xi1>, vector<2x1024xf32>
    %360 = arith.mulf %359, %19 : vector<2x1024xf32>
    %361 = arith.mulf %360, %341 : vector<2x1024xf32>
    %cst_116 = arith.constant 1.000000e+00 : f32
    %362 = vector.broadcast %cst_116 : f32 to vector<2x1024xf32>
    %363 = arith.addf %362, %361 : vector<2x1024xf32>
    %364 = math.absf %363 : vector<2x1024xf32>
    %cst_117 = arith.constant 1.000000e-30 : f32
    %365 = vector.broadcast %cst_117 : f32 to vector<2x1024xf32>
    %366 = arith.cmpf olt, %364, %365 : vector<2x1024xf32>
    %cst_118 = arith.constant 1.000000e-30 : f32
    %367 = vector.broadcast %cst_118 : f32 to vector<2x1024xf32>
    %368 = arith.select %366, %367, %363 : vector<2x1024xi1>, vector<2x1024xf32>
    %369 = tpu.reciprocal %368 {approx = true} : vector<2x1024xf32> -> vector<2x1024xf32>
    %370 = arith.mulf %368, %369 : vector<2x1024xf32>
    %cst_119 = arith.constant 2.000000e+00 : f32
    %371 = vector.broadcast %cst_119 : f32 to vector<2x1024xf32>
    %372 = arith.subf %371, %370 : vector<2x1024xf32>
    %373 = arith.mulf %369, %372 : vector<2x1024xf32>
    %374 = tpu.reciprocal %354 {approx = true} : vector<2x1024xf32> -> vector<2x1024xf32>
    %375 = arith.mulf %354, %374 : vector<2x1024xf32>
    %cst_120 = arith.constant 2.000000e+00 : f32
    %376 = vector.broadcast %cst_120 : f32 to vector<2x1024xf32>
    %377 = arith.subf %376, %375 : vector<2x1024xf32>
    %378 = arith.mulf %374, %377 : vector<2x1024xf32>
    %379 = arith.mulf %360, %378 : vector<2x1024xf32>
    %cst_121 = arith.constant 1.000000e+00 : f32
    %380 = vector.broadcast %cst_121 : f32 to vector<2x1024xf32>
    %381 = arith.addf %380, %379 : vector<2x1024xf32>
    %382 = math.absf %381 : vector<2x1024xf32>
    %cst_122 = arith.constant 1.000000e-30 : f32
    %383 = vector.broadcast %cst_122 : f32 to vector<2x1024xf32>
    %384 = arith.cmpf olt, %382, %383 : vector<2x1024xf32>
    %cst_123 = arith.constant 1.000000e-30 : f32
    %385 = vector.broadcast %cst_123 : f32 to vector<2x1024xf32>
    %386 = arith.select %384, %385, %381 : vector<2x1024xi1>, vector<2x1024xf32>
    %387 = arith.mulf %356, %373 : vector<2x1024xf32>
    %388 = arith.mulf %387, %386 : vector<2x1024xf32>
    %cst_124 = arith.constant -3.134020e-01 : f32
    %cst_125 = arith.constant -0.314439744 : f32
    %389 = vector.broadcast %cst_124 : f32 to vector<2x1024xf32>
    %390 = vector.broadcast %cst_125 : f32 to vector<2x1024xf32>
    %391 = arith.select %8, %389, %390 : vector<2x1024xi1>, vector<2x1024xf32>
    %392 = arith.mulf %391, %19 : vector<2x1024xf32>
    %393 = arith.mulf %392, %373 : vector<2x1024xf32>
    %cst_126 = arith.constant 1.000000e+00 : f32
    %394 = vector.broadcast %cst_126 : f32 to vector<2x1024xf32>
    %395 = arith.addf %394, %393 : vector<2x1024xf32>
    %396 = math.absf %395 : vector<2x1024xf32>
    %cst_127 = arith.constant 1.000000e-30 : f32
    %397 = vector.broadcast %cst_127 : f32 to vector<2x1024xf32>
    %398 = arith.cmpf olt, %396, %397 : vector<2x1024xf32>
    %cst_128 = arith.constant 1.000000e-30 : f32
    %399 = vector.broadcast %cst_128 : f32 to vector<2x1024xf32>
    %400 = arith.select %398, %399, %395 : vector<2x1024xi1>, vector<2x1024xf32>
    %401 = tpu.reciprocal %400 {approx = true} : vector<2x1024xf32> -> vector<2x1024xf32>
    %402 = arith.mulf %400, %401 : vector<2x1024xf32>
    %cst_129 = arith.constant 2.000000e+00 : f32
    %403 = vector.broadcast %cst_129 : f32 to vector<2x1024xf32>
    %404 = arith.subf %403, %402 : vector<2x1024xf32>
    %405 = arith.mulf %401, %404 : vector<2x1024xf32>
    %406 = tpu.reciprocal %386 {approx = true} : vector<2x1024xf32> -> vector<2x1024xf32>
    %407 = arith.mulf %386, %406 : vector<2x1024xf32>
    %cst_130 = arith.constant 2.000000e+00 : f32
    %408 = vector.broadcast %cst_130 : f32 to vector<2x1024xf32>
    %409 = arith.subf %408, %407 : vector<2x1024xf32>
    %410 = arith.mulf %406, %409 : vector<2x1024xf32>
    %411 = arith.mulf %392, %410 : vector<2x1024xf32>
    %cst_131 = arith.constant 1.000000e+00 : f32
    %412 = vector.broadcast %cst_131 : f32 to vector<2x1024xf32>
    %413 = arith.addf %412, %411 : vector<2x1024xf32>
    %414 = math.absf %413 : vector<2x1024xf32>
    %cst_132 = arith.constant 1.000000e-30 : f32
    %415 = vector.broadcast %cst_132 : f32 to vector<2x1024xf32>
    %416 = arith.cmpf olt, %414, %415 : vector<2x1024xf32>
    %cst_133 = arith.constant 1.000000e-30 : f32
    %417 = vector.broadcast %cst_133 : f32 to vector<2x1024xf32>
    %418 = arith.select %416, %417, %413 : vector<2x1024xi1>, vector<2x1024xf32>
    %419 = arith.mulf %388, %405 : vector<2x1024xf32>
    %420 = arith.mulf %419, %418 : vector<2x1024xf32>
    %cst_134 = arith.constant -0.19643718 : f32
    %cst_135 = arith.constant -0.193142653 : f32
    %421 = vector.broadcast %cst_134 : f32 to vector<2x1024xf32>
    %422 = vector.broadcast %cst_135 : f32 to vector<2x1024xf32>
    %423 = arith.select %8, %421, %422 : vector<2x1024xi1>, vector<2x1024xf32>
    %424 = arith.mulf %423, %19 : vector<2x1024xf32>
    %425 = arith.mulf %424, %405 : vector<2x1024xf32>
    %cst_136 = arith.constant 1.000000e+00 : f32
    %426 = vector.broadcast %cst_136 : f32 to vector<2x1024xf32>
    %427 = arith.addf %426, %425 : vector<2x1024xf32>
    %428 = math.absf %427 : vector<2x1024xf32>
    %cst_137 = arith.constant 1.000000e-30 : f32
    %429 = vector.broadcast %cst_137 : f32 to vector<2x1024xf32>
    %430 = arith.cmpf olt, %428, %429 : vector<2x1024xf32>
    %cst_138 = arith.constant 1.000000e-30 : f32
    %431 = vector.broadcast %cst_138 : f32 to vector<2x1024xf32>
    %432 = arith.select %430, %431, %427 : vector<2x1024xi1>, vector<2x1024xf32>
    %433 = tpu.reciprocal %432 {approx = true} : vector<2x1024xf32> -> vector<2x1024xf32>
    %434 = arith.mulf %432, %433 : vector<2x1024xf32>
    %cst_139 = arith.constant 2.000000e+00 : f32
    %435 = vector.broadcast %cst_139 : f32 to vector<2x1024xf32>
    %436 = arith.subf %435, %434 : vector<2x1024xf32>
    %437 = arith.mulf %433, %436 : vector<2x1024xf32>
    %438 = tpu.reciprocal %418 {approx = true} : vector<2x1024xf32> -> vector<2x1024xf32>
    %439 = arith.mulf %418, %438 : vector<2x1024xf32>
    %cst_140 = arith.constant 2.000000e+00 : f32
    %440 = vector.broadcast %cst_140 : f32 to vector<2x1024xf32>
    %441 = arith.subf %440, %439 : vector<2x1024xf32>
    %442 = arith.mulf %438, %441 : vector<2x1024xf32>
    %443 = arith.mulf %424, %442 : vector<2x1024xf32>
    %cst_141 = arith.constant 1.000000e+00 : f32
    %444 = vector.broadcast %cst_141 : f32 to vector<2x1024xf32>
    %445 = arith.addf %444, %443 : vector<2x1024xf32>
    %446 = math.absf %445 : vector<2x1024xf32>
    %cst_142 = arith.constant 1.000000e-30 : f32
    %447 = vector.broadcast %cst_142 : f32 to vector<2x1024xf32>
    %448 = arith.cmpf olt, %446, %447 : vector<2x1024xf32>
    %cst_143 = arith.constant 1.000000e-30 : f32
    %449 = vector.broadcast %cst_143 : f32 to vector<2x1024xf32>
    %450 = arith.select %448, %449, %445 : vector<2x1024xi1>, vector<2x1024xf32>
    %451 = arith.mulf %420, %437 : vector<2x1024xf32>
    %452 = arith.mulf %451, %450 : vector<2x1024xf32>
    %cst_144 = arith.constant -0.305044562 : f32
    %cst_145 = arith.constant -0.305813134 : f32
    %453 = vector.broadcast %cst_144 : f32 to vector<2x1024xf32>
    %454 = vector.broadcast %cst_145 : f32 to vector<2x1024xf32>
    %455 = arith.select %8, %453, %454 : vector<2x1024xi1>, vector<2x1024xf32>
    %456 = arith.mulf %455, %19 : vector<2x1024xf32>
    %457 = arith.mulf %456, %437 : vector<2x1024xf32>
    %cst_146 = arith.constant 1.000000e+00 : f32
    %458 = vector.broadcast %cst_146 : f32 to vector<2x1024xf32>
    %459 = arith.addf %458, %457 : vector<2x1024xf32>
    %460 = math.absf %459 : vector<2x1024xf32>
    %cst_147 = arith.constant 1.000000e-30 : f32
    %461 = vector.broadcast %cst_147 : f32 to vector<2x1024xf32>
    %462 = arith.cmpf olt, %460, %461 : vector<2x1024xf32>
    %cst_148 = arith.constant 1.000000e-30 : f32
    %463 = vector.broadcast %cst_148 : f32 to vector<2x1024xf32>
    %464 = arith.select %462, %463, %459 : vector<2x1024xi1>, vector<2x1024xf32>
    %465 = tpu.reciprocal %464 {approx = true} : vector<2x1024xf32> -> vector<2x1024xf32>
    %466 = arith.mulf %464, %465 : vector<2x1024xf32>
    %cst_149 = arith.constant 2.000000e+00 : f32
    %467 = vector.broadcast %cst_149 : f32 to vector<2x1024xf32>
    %468 = arith.subf %467, %466 : vector<2x1024xf32>
    %469 = arith.mulf %465, %468 : vector<2x1024xf32>
    %470 = tpu.reciprocal %450 {approx = true} : vector<2x1024xf32> -> vector<2x1024xf32>
    %471 = arith.mulf %450, %470 : vector<2x1024xf32>
    %cst_150 = arith.constant 2.000000e+00 : f32
    %472 = vector.broadcast %cst_150 : f32 to vector<2x1024xf32>
    %473 = arith.subf %472, %471 : vector<2x1024xf32>
    %474 = arith.mulf %470, %473 : vector<2x1024xf32>
    %475 = arith.mulf %456, %474 : vector<2x1024xf32>
    %cst_151 = arith.constant 1.000000e+00 : f32
    %476 = vector.broadcast %cst_151 : f32 to vector<2x1024xf32>
    %477 = arith.addf %476, %475 : vector<2x1024xf32>
    %478 = math.absf %477 : vector<2x1024xf32>
    %cst_152 = arith.constant 1.000000e-30 : f32
    %479 = vector.broadcast %cst_152 : f32 to vector<2x1024xf32>
    %480 = arith.cmpf olt, %478, %479 : vector<2x1024xf32>
    %cst_153 = arith.constant 1.000000e-30 : f32
    %481 = vector.broadcast %cst_153 : f32 to vector<2x1024xf32>
    %482 = arith.select %480, %481, %477 : vector<2x1024xi1>, vector<2x1024xf32>
    %483 = arith.mulf %452, %469 : vector<2x1024xf32>
    %484 = arith.mulf %483, %482 : vector<2x1024xf32>
    %cst_154 = arith.constant -0.202526212 : f32
    %cst_155 = arith.constant -0.199965924 : f32
    %485 = vector.broadcast %cst_154 : f32 to vector<2x1024xf32>
    %486 = vector.broadcast %cst_155 : f32 to vector<2x1024xf32>
    %487 = arith.select %8, %485, %486 : vector<2x1024xi1>, vector<2x1024xf32>
    %488 = arith.mulf %487, %19 : vector<2x1024xf32>
    %489 = arith.mulf %488, %469 : vector<2x1024xf32>
    %cst_156 = arith.constant 1.000000e+00 : f32
    %490 = vector.broadcast %cst_156 : f32 to vector<2x1024xf32>
    %491 = arith.addf %490, %489 : vector<2x1024xf32>
    %492 = math.absf %491 : vector<2x1024xf32>
    %cst_157 = arith.constant 1.000000e-30 : f32
    %493 = vector.broadcast %cst_157 : f32 to vector<2x1024xf32>
    %494 = arith.cmpf olt, %492, %493 : vector<2x1024xf32>
    %cst_158 = arith.constant 1.000000e-30 : f32
    %495 = vector.broadcast %cst_158 : f32 to vector<2x1024xf32>
    %496 = arith.select %494, %495, %491 : vector<2x1024xi1>, vector<2x1024xf32>
    %497 = tpu.reciprocal %496 {approx = true} : vector<2x1024xf32> -> vector<2x1024xf32>
    %498 = arith.mulf %496, %497 : vector<2x1024xf32>
    %cst_159 = arith.constant 2.000000e+00 : f32
    %499 = vector.broadcast %cst_159 : f32 to vector<2x1024xf32>
    %500 = arith.subf %499, %498 : vector<2x1024xf32>
    %501 = arith.mulf %497, %500 : vector<2x1024xf32>
    %502 = tpu.reciprocal %482 {approx = true} : vector<2x1024xf32> -> vector<2x1024xf32>
    %503 = arith.mulf %482, %502 : vector<2x1024xf32>
    %cst_160 = arith.constant 2.000000e+00 : f32
    %504 = vector.broadcast %cst_160 : f32 to vector<2x1024xf32>
    %505 = arith.subf %504, %503 : vector<2x1024xf32>
    %506 = arith.mulf %502, %505 : vector<2x1024xf32>
    %507 = arith.mulf %488, %506 : vector<2x1024xf32>
    %cst_161 = arith.constant 1.000000e+00 : f32
    %508 = vector.broadcast %cst_161 : f32 to vector<2x1024xf32>
    %509 = arith.addf %508, %507 : vector<2x1024xf32>
    %510 = math.absf %509 : vector<2x1024xf32>
    %cst_162 = arith.constant 1.000000e-30 : f32
    %511 = vector.broadcast %cst_162 : f32 to vector<2x1024xf32>
    %512 = arith.cmpf olt, %510, %511 : vector<2x1024xf32>
    %cst_163 = arith.constant 1.000000e-30 : f32
    %513 = vector.broadcast %cst_163 : f32 to vector<2x1024xf32>
    %514 = arith.select %512, %513, %509 : vector<2x1024xi1>, vector<2x1024xf32>
    %515 = arith.mulf %484, %501 : vector<2x1024xf32>
    %516 = arith.mulf %515, %514 : vector<2x1024xf32>
    %cst_164 = arith.constant -0.298632532 : f32
    %cst_165 = arith.constant -0.299224257 : f32
    %517 = vector.broadcast %cst_164 : f32 to vector<2x1024xf32>
    %518 = vector.broadcast %cst_165 : f32 to vector<2x1024xf32>
    %519 = arith.select %8, %517, %518 : vector<2x1024xi1>, vector<2x1024xf32>
    %520 = arith.mulf %519, %19 : vector<2x1024xf32>
    %521 = arith.mulf %520, %501 : vector<2x1024xf32>
    %cst_166 = arith.constant 1.000000e+00 : f32
    %522 = vector.broadcast %cst_166 : f32 to vector<2x1024xf32>
    %523 = arith.addf %522, %521 : vector<2x1024xf32>
    %524 = math.absf %523 : vector<2x1024xf32>
    %cst_167 = arith.constant 1.000000e-30 : f32
    %525 = vector.broadcast %cst_167 : f32 to vector<2x1024xf32>
    %526 = arith.cmpf olt, %524, %525 : vector<2x1024xf32>
    %cst_168 = arith.constant 1.000000e-30 : f32
    %527 = vector.broadcast %cst_168 : f32 to vector<2x1024xf32>
    %528 = arith.select %526, %527, %523 : vector<2x1024xi1>, vector<2x1024xf32>
    %529 = tpu.reciprocal %528 {approx = true} : vector<2x1024xf32> -> vector<2x1024xf32>
    %530 = arith.mulf %528, %529 : vector<2x1024xf32>
    %cst_169 = arith.constant 2.000000e+00 : f32
    %531 = vector.broadcast %cst_169 : f32 to vector<2x1024xf32>
    %532 = arith.subf %531, %530 : vector<2x1024xf32>
    %533 = arith.mulf %529, %532 : vector<2x1024xf32>
    %534 = tpu.reciprocal %514 {approx = true} : vector<2x1024xf32> -> vector<2x1024xf32>
    %535 = arith.mulf %514, %534 : vector<2x1024xf32>
    %cst_170 = arith.constant 2.000000e+00 : f32
    %536 = vector.broadcast %cst_170 : f32 to vector<2x1024xf32>
    %537 = arith.subf %536, %535 : vector<2x1024xf32>
    %538 = arith.mulf %534, %537 : vector<2x1024xf32>
    %539 = arith.mulf %520, %538 : vector<2x1024xf32>
    %cst_171 = arith.constant 1.000000e+00 : f32
    %540 = vector.broadcast %cst_171 : f32 to vector<2x1024xf32>
    %541 = arith.addf %540, %539 : vector<2x1024xf32>
    %542 = math.absf %541 : vector<2x1024xf32>
    %cst_172 = arith.constant 1.000000e-30 : f32
    %543 = vector.broadcast %cst_172 : f32 to vector<2x1024xf32>
    %544 = arith.cmpf olt, %542, %543 : vector<2x1024xf32>
    %cst_173 = arith.constant 1.000000e-30 : f32
    %545 = vector.broadcast %cst_173 : f32 to vector<2x1024xf32>
    %546 = arith.select %544, %545, %541 : vector<2x1024xi1>, vector<2x1024xf32>
    %547 = arith.mulf %516, %533 : vector<2x1024xf32>
    %548 = arith.mulf %547, %546 : vector<2x1024xf32>
    %cst_174 = arith.constant -0.207373217 : f32
    %cst_175 = arith.constant -0.205326438 : f32
    %549 = vector.broadcast %cst_174 : f32 to vector<2x1024xf32>
    %550 = vector.broadcast %cst_175 : f32 to vector<2x1024xf32>
    %551 = arith.select %8, %549, %550 : vector<2x1024xi1>, vector<2x1024xf32>
    %552 = arith.mulf %551, %19 : vector<2x1024xf32>
    %553 = arith.mulf %552, %533 : vector<2x1024xf32>
    %cst_176 = arith.constant 1.000000e+00 : f32
    %554 = vector.broadcast %cst_176 : f32 to vector<2x1024xf32>
    %555 = arith.addf %554, %553 : vector<2x1024xf32>
    %556 = math.absf %555 : vector<2x1024xf32>
    %cst_177 = arith.constant 1.000000e-30 : f32
    %557 = vector.broadcast %cst_177 : f32 to vector<2x1024xf32>
    %558 = arith.cmpf olt, %556, %557 : vector<2x1024xf32>
    %cst_178 = arith.constant 1.000000e-30 : f32
    %559 = vector.broadcast %cst_178 : f32 to vector<2x1024xf32>
    %560 = arith.select %558, %559, %555 : vector<2x1024xi1>, vector<2x1024xf32>
    %561 = tpu.reciprocal %560 {approx = true} : vector<2x1024xf32> -> vector<2x1024xf32>
    %562 = arith.mulf %560, %561 : vector<2x1024xf32>
    %cst_179 = arith.constant 2.000000e+00 : f32
    %563 = vector.broadcast %cst_179 : f32 to vector<2x1024xf32>
    %564 = arith.subf %563, %562 : vector<2x1024xf32>
    %565 = arith.mulf %561, %564 : vector<2x1024xf32>
    %566 = tpu.reciprocal %546 {approx = true} : vector<2x1024xf32> -> vector<2x1024xf32>
    %567 = arith.mulf %546, %566 : vector<2x1024xf32>
    %cst_180 = arith.constant 2.000000e+00 : f32
    %568 = vector.broadcast %cst_180 : f32 to vector<2x1024xf32>
    %569 = arith.subf %568, %567 : vector<2x1024xf32>
    %570 = arith.mulf %566, %569 : vector<2x1024xf32>
    %571 = arith.mulf %552, %570 : vector<2x1024xf32>
    %cst_181 = arith.constant 1.000000e+00 : f32
    %572 = vector.broadcast %cst_181 : f32 to vector<2x1024xf32>
    %573 = arith.addf %572, %571 : vector<2x1024xf32>
    %574 = math.absf %573 : vector<2x1024xf32>
    %cst_182 = arith.constant 1.000000e-30 : f32
    %575 = vector.broadcast %cst_182 : f32 to vector<2x1024xf32>
    %576 = arith.cmpf olt, %574, %575 : vector<2x1024xf32>
    %cst_183 = arith.constant 1.000000e-30 : f32
    %577 = vector.broadcast %cst_183 : f32 to vector<2x1024xf32>
    %578 = arith.select %576, %577, %573 : vector<2x1024xi1>, vector<2x1024xf32>
    %579 = arith.mulf %548, %565 : vector<2x1024xf32>
    %580 = arith.mulf %579, %578 : vector<2x1024xf32>
    %cst_184 = arith.constant -0.293557763 : f32
    %cst_185 = arith.constant -0.294027209 : f32
    %581 = vector.broadcast %cst_184 : f32 to vector<2x1024xf32>
    %582 = vector.broadcast %cst_185 : f32 to vector<2x1024xf32>
    %583 = arith.select %8, %581, %582 : vector<2x1024xi1>, vector<2x1024xf32>
    %584 = arith.mulf %583, %19 : vector<2x1024xf32>
    %585 = arith.mulf %584, %565 : vector<2x1024xf32>
    %cst_186 = arith.constant 1.000000e+00 : f32
    %586 = vector.broadcast %cst_186 : f32 to vector<2x1024xf32>
    %587 = arith.addf %586, %585 : vector<2x1024xf32>
    %588 = math.absf %587 : vector<2x1024xf32>
    %cst_187 = arith.constant 1.000000e-30 : f32
    %589 = vector.broadcast %cst_187 : f32 to vector<2x1024xf32>
    %590 = arith.cmpf olt, %588, %589 : vector<2x1024xf32>
    %cst_188 = arith.constant 1.000000e-30 : f32
    %591 = vector.broadcast %cst_188 : f32 to vector<2x1024xf32>
    %592 = arith.select %590, %591, %587 : vector<2x1024xi1>, vector<2x1024xf32>
    %593 = tpu.reciprocal %592 {approx = true} : vector<2x1024xf32> -> vector<2x1024xf32>
    %594 = arith.mulf %592, %593 : vector<2x1024xf32>
    %cst_189 = arith.constant 2.000000e+00 : f32
    %595 = vector.broadcast %cst_189 : f32 to vector<2x1024xf32>
    %596 = arith.subf %595, %594 : vector<2x1024xf32>
    %597 = arith.mulf %593, %596 : vector<2x1024xf32>
    %598 = tpu.reciprocal %578 {approx = true} : vector<2x1024xf32> -> vector<2x1024xf32>
    %599 = arith.mulf %578, %598 : vector<2x1024xf32>
    %cst_190 = arith.constant 2.000000e+00 : f32
    %600 = vector.broadcast %cst_190 : f32 to vector<2x1024xf32>
    %601 = arith.subf %600, %599 : vector<2x1024xf32>
    %602 = arith.mulf %598, %601 : vector<2x1024xf32>
    %603 = arith.mulf %584, %602 : vector<2x1024xf32>
    %cst_191 = arith.constant 1.000000e+00 : f32
    %604 = vector.broadcast %cst_191 : f32 to vector<2x1024xf32>
    %605 = arith.addf %604, %603 : vector<2x1024xf32>
    %606 = math.absf %605 : vector<2x1024xf32>
    %cst_192 = arith.constant 1.000000e-30 : f32
    %607 = vector.broadcast %cst_192 : f32 to vector<2x1024xf32>
    %608 = arith.cmpf olt, %606, %607 : vector<2x1024xf32>
    %cst_193 = arith.constant 1.000000e-30 : f32
    %609 = vector.broadcast %cst_193 : f32 to vector<2x1024xf32>
    %610 = arith.select %608, %609, %605 : vector<2x1024xi1>, vector<2x1024xf32>
    %611 = arith.mulf %580, %597 : vector<2x1024xf32>
    %612 = arith.mulf %611, %610 : vector<2x1024xf32>
    %cst_194 = arith.constant -0.211322784 : f32
    %cst_195 = arith.constant -0.209649146 : f32
    %613 = vector.broadcast %cst_194 : f32 to vector<2x1024xf32>
    %614 = vector.broadcast %cst_195 : f32 to vector<2x1024xf32>
    %615 = arith.select %8, %613, %614 : vector<2x1024xi1>, vector<2x1024xf32>
    %616 = arith.mulf %615, %19 : vector<2x1024xf32>
    %617 = arith.mulf %616, %597 : vector<2x1024xf32>
    %cst_196 = arith.constant 1.000000e+00 : f32
    %618 = vector.broadcast %cst_196 : f32 to vector<2x1024xf32>
    %619 = arith.addf %618, %617 : vector<2x1024xf32>
    %620 = math.absf %619 : vector<2x1024xf32>
    %cst_197 = arith.constant 1.000000e-30 : f32
    %621 = vector.broadcast %cst_197 : f32 to vector<2x1024xf32>
    %622 = arith.cmpf olt, %620, %621 : vector<2x1024xf32>
    %cst_198 = arith.constant 1.000000e-30 : f32
    %623 = vector.broadcast %cst_198 : f32 to vector<2x1024xf32>
    %624 = arith.select %622, %623, %619 : vector<2x1024xi1>, vector<2x1024xf32>
    %625 = tpu.reciprocal %624 {approx = true} : vector<2x1024xf32> -> vector<2x1024xf32>
    %626 = arith.mulf %624, %625 : vector<2x1024xf32>
    %cst_199 = arith.constant 2.000000e+00 : f32
    %627 = vector.broadcast %cst_199 : f32 to vector<2x1024xf32>
    %628 = arith.subf %627, %626 : vector<2x1024xf32>
    %629 = arith.mulf %625, %628 : vector<2x1024xf32>
    %630 = tpu.reciprocal %610 {approx = true} : vector<2x1024xf32> -> vector<2x1024xf32>
    %631 = arith.mulf %610, %630 : vector<2x1024xf32>
    %cst_200 = arith.constant 2.000000e+00 : f32
    %632 = vector.broadcast %cst_200 : f32 to vector<2x1024xf32>
    %633 = arith.subf %632, %631 : vector<2x1024xf32>
    %634 = arith.mulf %630, %633 : vector<2x1024xf32>
    %635 = arith.mulf %616, %634 : vector<2x1024xf32>
    %cst_201 = arith.constant 1.000000e+00 : f32
    %636 = vector.broadcast %cst_201 : f32 to vector<2x1024xf32>
    %637 = arith.addf %636, %635 : vector<2x1024xf32>
    %638 = math.absf %637 : vector<2x1024xf32>
    %cst_202 = arith.constant 1.000000e-30 : f32
    %639 = vector.broadcast %cst_202 : f32 to vector<2x1024xf32>
    %640 = arith.cmpf olt, %638, %639 : vector<2x1024xf32>
    %cst_203 = arith.constant 1.000000e-30 : f32
    %641 = vector.broadcast %cst_203 : f32 to vector<2x1024xf32>
    %642 = arith.select %640, %641, %637 : vector<2x1024xi1>, vector<2x1024xf32>
    %643 = arith.mulf %612, %629 : vector<2x1024xf32>
    %644 = arith.mulf %643, %642 : vector<2x1024xf32>
    %cst_204 = arith.constant -0.289441586 : f32
    %cst_205 = arith.constant -2.898230e-01 : f32
    %645 = vector.broadcast %cst_204 : f32 to vector<2x1024xf32>
    %646 = vector.broadcast %cst_205 : f32 to vector<2x1024xf32>
    %647 = arith.select %8, %645, %646 : vector<2x1024xi1>, vector<2x1024xf32>
    %648 = arith.mulf %647, %19 : vector<2x1024xf32>
    %649 = arith.mulf %648, %629 : vector<2x1024xf32>
    %cst_206 = arith.constant 1.000000e+00 : f32
    %650 = vector.broadcast %cst_206 : f32 to vector<2x1024xf32>
    %651 = arith.addf %650, %649 : vector<2x1024xf32>
    %652 = math.absf %651 : vector<2x1024xf32>
    %cst_207 = arith.constant 1.000000e-30 : f32
    %653 = vector.broadcast %cst_207 : f32 to vector<2x1024xf32>
    %654 = arith.cmpf olt, %652, %653 : vector<2x1024xf32>
    %cst_208 = arith.constant 1.000000e-30 : f32
    %655 = vector.broadcast %cst_208 : f32 to vector<2x1024xf32>
    %656 = arith.select %654, %655, %651 : vector<2x1024xi1>, vector<2x1024xf32>
    %657 = tpu.reciprocal %656 {approx = true} : vector<2x1024xf32> -> vector<2x1024xf32>
    %658 = arith.mulf %656, %657 : vector<2x1024xf32>
    %cst_209 = arith.constant 2.000000e+00 : f32
    %659 = vector.broadcast %cst_209 : f32 to vector<2x1024xf32>
    %660 = arith.subf %659, %658 : vector<2x1024xf32>
    %661 = arith.mulf %657, %660 : vector<2x1024xf32>
    %662 = tpu.reciprocal %642 {approx = true} : vector<2x1024xf32> -> vector<2x1024xf32>
    %663 = arith.mulf %642, %662 : vector<2x1024xf32>
    %cst_210 = arith.constant 2.000000e+00 : f32
    %664 = vector.broadcast %cst_210 : f32 to vector<2x1024xf32>
    %665 = arith.subf %664, %663 : vector<2x1024xf32>
    %666 = arith.mulf %662, %665 : vector<2x1024xf32>
    %667 = arith.mulf %648, %666 : vector<2x1024xf32>
    %cst_211 = arith.constant 1.000000e+00 : f32
    %668 = vector.broadcast %cst_211 : f32 to vector<2x1024xf32>
    %669 = arith.addf %668, %667 : vector<2x1024xf32>
    %670 = math.absf %669 : vector<2x1024xf32>
    %cst_212 = arith.constant 1.000000e-30 : f32
    %671 = vector.broadcast %cst_212 : f32 to vector<2x1024xf32>
    %672 = arith.cmpf olt, %670, %671 : vector<2x1024xf32>
    %cst_213 = arith.constant 1.000000e-30 : f32
    %673 = vector.broadcast %cst_213 : f32 to vector<2x1024xf32>
    %674 = arith.select %672, %673, %669 : vector<2x1024xi1>, vector<2x1024xf32>
    %675 = arith.mulf %644, %661 : vector<2x1024xf32>
    %676 = arith.mulf %675, %674 : vector<2x1024xf32>
    %cst_214 = arith.constant -0.214602888 : f32
    %cst_215 = arith.constant -0.213208929 : f32
    %677 = vector.broadcast %cst_214 : f32 to vector<2x1024xf32>
    %678 = vector.broadcast %cst_215 : f32 to vector<2x1024xf32>
    %679 = arith.select %8, %677, %678 : vector<2x1024xi1>, vector<2x1024xf32>
    %680 = arith.mulf %679, %19 : vector<2x1024xf32>
    %681 = arith.mulf %680, %661 : vector<2x1024xf32>
    %cst_216 = arith.constant 1.000000e+00 : f32
    %682 = vector.broadcast %cst_216 : f32 to vector<2x1024xf32>
    %683 = arith.addf %682, %681 : vector<2x1024xf32>
    %684 = math.absf %683 : vector<2x1024xf32>
    %cst_217 = arith.constant 1.000000e-30 : f32
    %685 = vector.broadcast %cst_217 : f32 to vector<2x1024xf32>
    %686 = arith.cmpf olt, %684, %685 : vector<2x1024xf32>
    %cst_218 = arith.constant 1.000000e-30 : f32
    %687 = vector.broadcast %cst_218 : f32 to vector<2x1024xf32>
    %688 = arith.select %686, %687, %683 : vector<2x1024xi1>, vector<2x1024xf32>
    %689 = tpu.reciprocal %688 {approx = true} : vector<2x1024xf32> -> vector<2x1024xf32>
    %690 = arith.mulf %688, %689 : vector<2x1024xf32>
    %cst_219 = arith.constant 2.000000e+00 : f32
    %691 = vector.broadcast %cst_219 : f32 to vector<2x1024xf32>
    %692 = arith.subf %691, %690 : vector<2x1024xf32>
    %693 = arith.mulf %689, %692 : vector<2x1024xf32>
    %694 = tpu.reciprocal %674 {approx = true} : vector<2x1024xf32> -> vector<2x1024xf32>
    %695 = arith.mulf %674, %694 : vector<2x1024xf32>
    %cst_220 = arith.constant 2.000000e+00 : f32
    %696 = vector.broadcast %cst_220 : f32 to vector<2x1024xf32>
    %697 = arith.subf %696, %695 : vector<2x1024xf32>
    %698 = arith.mulf %694, %697 : vector<2x1024xf32>
    %699 = arith.mulf %680, %698 : vector<2x1024xf32>
    %cst_221 = arith.constant 1.000000e+00 : f32
    %700 = vector.broadcast %cst_221 : f32 to vector<2x1024xf32>
    %701 = arith.addf %700, %699 : vector<2x1024xf32>
    %702 = math.absf %701 : vector<2x1024xf32>
    %cst_222 = arith.constant 1.000000e-30 : f32
    %703 = vector.broadcast %cst_222 : f32 to vector<2x1024xf32>
    %704 = arith.cmpf olt, %702, %703 : vector<2x1024xf32>
    %cst_223 = arith.constant 1.000000e-30 : f32
    %705 = vector.broadcast %cst_223 : f32 to vector<2x1024xf32>
    %706 = arith.select %704, %705, %701 : vector<2x1024xi1>, vector<2x1024xf32>
    %707 = arith.mulf %676, %693 : vector<2x1024xf32>
    %708 = arith.mulf %707, %706 : vector<2x1024xf32>
    %cst_224 = arith.constant -0.286035895 : f32
    %cst_225 = arith.constant -0.28635186 : f32
    %709 = vector.broadcast %cst_224 : f32 to vector<2x1024xf32>
    %710 = vector.broadcast %cst_225 : f32 to vector<2x1024xf32>
    %711 = arith.select %8, %709, %710 : vector<2x1024xi1>, vector<2x1024xf32>
    %712 = arith.mulf %711, %19 : vector<2x1024xf32>
    %713 = arith.mulf %712, %693 : vector<2x1024xf32>
    %cst_226 = arith.constant 1.000000e+00 : f32
    %714 = vector.broadcast %cst_226 : f32 to vector<2x1024xf32>
    %715 = arith.addf %714, %713 : vector<2x1024xf32>
    %716 = math.absf %715 : vector<2x1024xf32>
    %cst_227 = arith.constant 1.000000e-30 : f32
    %717 = vector.broadcast %cst_227 : f32 to vector<2x1024xf32>
    %718 = arith.cmpf olt, %716, %717 : vector<2x1024xf32>
    %cst_228 = arith.constant 1.000000e-30 : f32
    %719 = vector.broadcast %cst_228 : f32 to vector<2x1024xf32>
    %720 = arith.select %718, %719, %715 : vector<2x1024xi1>, vector<2x1024xf32>
    %721 = tpu.reciprocal %720 {approx = true} : vector<2x1024xf32> -> vector<2x1024xf32>
    %722 = arith.mulf %720, %721 : vector<2x1024xf32>
    %cst_229 = arith.constant 2.000000e+00 : f32
    %723 = vector.broadcast %cst_229 : f32 to vector<2x1024xf32>
    %724 = arith.subf %723, %722 : vector<2x1024xf32>
    %725 = arith.mulf %721, %724 : vector<2x1024xf32>
    %726 = tpu.reciprocal %706 {approx = true} : vector<2x1024xf32> -> vector<2x1024xf32>
    %727 = arith.mulf %706, %726 : vector<2x1024xf32>
    %cst_230 = arith.constant 2.000000e+00 : f32
    %728 = vector.broadcast %cst_230 : f32 to vector<2x1024xf32>
    %729 = arith.subf %728, %727 : vector<2x1024xf32>
    %730 = arith.mulf %726, %729 : vector<2x1024xf32>
    %731 = arith.mulf %712, %730 : vector<2x1024xf32>
    %cst_231 = arith.constant 1.000000e+00 : f32
    %732 = vector.broadcast %cst_231 : f32 to vector<2x1024xf32>
    %733 = arith.addf %732, %731 : vector<2x1024xf32>
    %734 = math.absf %733 : vector<2x1024xf32>
    %cst_232 = arith.constant 1.000000e-30 : f32
    %735 = vector.broadcast %cst_232 : f32 to vector<2x1024xf32>
    %736 = arith.cmpf olt, %734, %735 : vector<2x1024xf32>
    %cst_233 = arith.constant 1.000000e-30 : f32
    %737 = vector.broadcast %cst_233 : f32 to vector<2x1024xf32>
    %738 = arith.select %736, %737, %733 : vector<2x1024xi1>, vector<2x1024xf32>
    %739 = arith.mulf %708, %725 : vector<2x1024xf32>
    %740 = arith.mulf %739, %738 : vector<2x1024xf32>
    %cst_234 = arith.constant -0.217370376 : f32
    %cst_235 = arith.constant -0.216191411 : f32
    %741 = vector.broadcast %cst_234 : f32 to vector<2x1024xf32>
    %742 = vector.broadcast %cst_235 : f32 to vector<2x1024xf32>
    %743 = arith.select %8, %741, %742 : vector<2x1024xi1>, vector<2x1024xf32>
    %744 = arith.mulf %743, %19 : vector<2x1024xf32>
    %745 = arith.mulf %744, %725 : vector<2x1024xf32>
    %cst_236 = arith.constant 1.000000e+00 : f32
    %746 = vector.broadcast %cst_236 : f32 to vector<2x1024xf32>
    %747 = arith.addf %746, %745 : vector<2x1024xf32>
    %748 = math.absf %747 : vector<2x1024xf32>
    %cst_237 = arith.constant 1.000000e-30 : f32
    %749 = vector.broadcast %cst_237 : f32 to vector<2x1024xf32>
    %750 = arith.cmpf olt, %748, %749 : vector<2x1024xf32>
    %cst_238 = arith.constant 1.000000e-30 : f32
    %751 = vector.broadcast %cst_238 : f32 to vector<2x1024xf32>
    %752 = arith.select %750, %751, %747 : vector<2x1024xi1>, vector<2x1024xf32>
    %753 = tpu.reciprocal %752 {approx = true} : vector<2x1024xf32> -> vector<2x1024xf32>
    %754 = arith.mulf %752, %753 : vector<2x1024xf32>
    %cst_239 = arith.constant 2.000000e+00 : f32
    %755 = vector.broadcast %cst_239 : f32 to vector<2x1024xf32>
    %756 = arith.subf %755, %754 : vector<2x1024xf32>
    %757 = arith.mulf %753, %756 : vector<2x1024xf32>
    %758 = tpu.reciprocal %738 {approx = true} : vector<2x1024xf32> -> vector<2x1024xf32>
    %759 = arith.mulf %738, %758 : vector<2x1024xf32>
    %cst_240 = arith.constant 2.000000e+00 : f32
    %760 = vector.broadcast %cst_240 : f32 to vector<2x1024xf32>
    %761 = arith.subf %760, %759 : vector<2x1024xf32>
    %762 = arith.mulf %758, %761 : vector<2x1024xf32>
    %763 = arith.mulf %744, %762 : vector<2x1024xf32>
    %cst_241 = arith.constant 1.000000e+00 : f32
    %764 = vector.broadcast %cst_241 : f32 to vector<2x1024xf32>
    %765 = arith.addf %764, %763 : vector<2x1024xf32>
    %766 = math.absf %765 : vector<2x1024xf32>
    %cst_242 = arith.constant 1.000000e-30 : f32
    %767 = vector.broadcast %cst_242 : f32 to vector<2x1024xf32>
    %768 = arith.cmpf olt, %766, %767 : vector<2x1024xf32>
    %cst_243 = arith.constant 1.000000e-30 : f32
    %769 = vector.broadcast %cst_243 : f32 to vector<2x1024xf32>
    %770 = arith.select %768, %769, %765 : vector<2x1024xi1>, vector<2x1024xf32>
    %771 = arith.mulf %740, %757 : vector<2x1024xf32>
    %772 = arith.mulf %771, %770 : vector<2x1024xf32>
    %cst_244 = arith.constant -0.283171445 : f32
    %cst_245 = arith.constant -0.283437431 : f32
    %773 = vector.broadcast %cst_244 : f32 to vector<2x1024xf32>
    %774 = vector.broadcast %cst_245 : f32 to vector<2x1024xf32>
    %775 = arith.select %8, %773, %774 : vector<2x1024xi1>, vector<2x1024xf32>
    %776 = arith.mulf %775, %19 : vector<2x1024xf32>
    %777 = arith.mulf %776, %757 : vector<2x1024xf32>
    %cst_246 = arith.constant 1.000000e+00 : f32
    %778 = vector.broadcast %cst_246 : f32 to vector<2x1024xf32>
    %779 = arith.addf %778, %777 : vector<2x1024xf32>
    %780 = math.absf %779 : vector<2x1024xf32>
    %cst_247 = arith.constant 1.000000e-30 : f32
    %781 = vector.broadcast %cst_247 : f32 to vector<2x1024xf32>
    %782 = arith.cmpf olt, %780, %781 : vector<2x1024xf32>
    %cst_248 = arith.constant 1.000000e-30 : f32
    %783 = vector.broadcast %cst_248 : f32 to vector<2x1024xf32>
    %784 = arith.select %782, %783, %779 : vector<2x1024xi1>, vector<2x1024xf32>
    %785 = tpu.reciprocal %784 {approx = true} : vector<2x1024xf32> -> vector<2x1024xf32>
    %786 = arith.mulf %784, %785 : vector<2x1024xf32>
    %cst_249 = arith.constant 2.000000e+00 : f32
    %787 = vector.broadcast %cst_249 : f32 to vector<2x1024xf32>
    %788 = arith.subf %787, %786 : vector<2x1024xf32>
    %789 = arith.mulf %785, %788 : vector<2x1024xf32>
    %790 = tpu.reciprocal %770 {approx = true} : vector<2x1024xf32> -> vector<2x1024xf32>
    %791 = arith.mulf %770, %790 : vector<2x1024xf32>
    %cst_250 = arith.constant 2.000000e+00 : f32
    %792 = vector.broadcast %cst_250 : f32 to vector<2x1024xf32>
    %793 = arith.subf %792, %791 : vector<2x1024xf32>
    %794 = arith.mulf %790, %793 : vector<2x1024xf32>
    %795 = arith.mulf %776, %794 : vector<2x1024xf32>
    %cst_251 = arith.constant 1.000000e+00 : f32
    %796 = vector.broadcast %cst_251 : f32 to vector<2x1024xf32>
    %797 = arith.addf %796, %795 : vector<2x1024xf32>
    %798 = math.absf %797 : vector<2x1024xf32>
    %cst_252 = arith.constant 1.000000e-30 : f32
    %799 = vector.broadcast %cst_252 : f32 to vector<2x1024xf32>
    %800 = arith.cmpf olt, %798, %799 : vector<2x1024xf32>
    %cst_253 = arith.constant 1.000000e-30 : f32
    %801 = vector.broadcast %cst_253 : f32 to vector<2x1024xf32>
    %802 = arith.select %800, %801, %797 : vector<2x1024xi1>, vector<2x1024xf32>
    %803 = arith.mulf %772, %789 : vector<2x1024xf32>
    %804 = arith.mulf %803, %802 : vector<2x1024xf32>
    %cst_254 = arith.constant -0.219736651 : f32
    %cst_255 = arith.constant -0.218726516 : f32
    %805 = vector.broadcast %cst_254 : f32 to vector<2x1024xf32>
    %806 = vector.broadcast %cst_255 : f32 to vector<2x1024xf32>
    %807 = arith.select %8, %805, %806 : vector<2x1024xi1>, vector<2x1024xf32>
    %808 = arith.mulf %807, %19 : vector<2x1024xf32>
    %809 = arith.mulf %808, %789 : vector<2x1024xf32>
    %cst_256 = arith.constant 1.000000e+00 : f32
    %810 = vector.broadcast %cst_256 : f32 to vector<2x1024xf32>
    %811 = arith.addf %810, %809 : vector<2x1024xf32>
    %812 = math.absf %811 : vector<2x1024xf32>
    %cst_257 = arith.constant 1.000000e-30 : f32
    %813 = vector.broadcast %cst_257 : f32 to vector<2x1024xf32>
    %814 = arith.cmpf olt, %812, %813 : vector<2x1024xf32>
    %cst_258 = arith.constant 1.000000e-30 : f32
    %815 = vector.broadcast %cst_258 : f32 to vector<2x1024xf32>
    %816 = arith.select %814, %815, %811 : vector<2x1024xi1>, vector<2x1024xf32>
    %817 = tpu.reciprocal %816 {approx = true} : vector<2x1024xf32> -> vector<2x1024xf32>
    %818 = arith.mulf %816, %817 : vector<2x1024xf32>
    %cst_259 = arith.constant 2.000000e+00 : f32
    %819 = vector.broadcast %cst_259 : f32 to vector<2x1024xf32>
    %820 = arith.subf %819, %818 : vector<2x1024xf32>
    %821 = arith.mulf %817, %820 : vector<2x1024xf32>
    %822 = tpu.reciprocal %802 {approx = true} : vector<2x1024xf32> -> vector<2x1024xf32>
    %823 = arith.mulf %802, %822 : vector<2x1024xf32>
    %cst_260 = arith.constant 2.000000e+00 : f32
    %824 = vector.broadcast %cst_260 : f32 to vector<2x1024xf32>
    %825 = arith.subf %824, %823 : vector<2x1024xf32>
    %826 = arith.mulf %822, %825 : vector<2x1024xf32>
    %827 = arith.mulf %808, %826 : vector<2x1024xf32>
    %cst_261 = arith.constant 1.000000e+00 : f32
    %828 = vector.broadcast %cst_261 : f32 to vector<2x1024xf32>
    %829 = arith.addf %828, %827 : vector<2x1024xf32>
    %830 = math.absf %829 : vector<2x1024xf32>
    %cst_262 = arith.constant 1.000000e-30 : f32
    %831 = vector.broadcast %cst_262 : f32 to vector<2x1024xf32>
    %832 = arith.cmpf olt, %830, %831 : vector<2x1024xf32>
    %cst_263 = arith.constant 1.000000e-30 : f32
    %833 = vector.broadcast %cst_263 : f32 to vector<2x1024xf32>
    %834 = arith.select %832, %833, %829 : vector<2x1024xi1>, vector<2x1024xf32>
    %835 = arith.mulf %804, %821 : vector<2x1024xf32>
    %836 = arith.mulf %835, %834 : vector<2x1024xf32>
    %cst_264 = arith.constant -0.280728728 : f32
    %cst_265 = arith.constant -0.280955672 : f32
    %837 = vector.broadcast %cst_264 : f32 to vector<2x1024xf32>
    %838 = vector.broadcast %cst_265 : f32 to vector<2x1024xf32>
    %839 = arith.select %8, %837, %838 : vector<2x1024xi1>, vector<2x1024xf32>
    %840 = arith.mulf %839, %19 : vector<2x1024xf32>
    %841 = arith.mulf %840, %821 : vector<2x1024xf32>
    %cst_266 = arith.constant 1.000000e+00 : f32
    %842 = vector.broadcast %cst_266 : f32 to vector<2x1024xf32>
    %843 = arith.addf %842, %841 : vector<2x1024xf32>
    %844 = math.absf %843 : vector<2x1024xf32>
    %cst_267 = arith.constant 1.000000e-30 : f32
    %845 = vector.broadcast %cst_267 : f32 to vector<2x1024xf32>
    %846 = arith.cmpf olt, %844, %845 : vector<2x1024xf32>
    %cst_268 = arith.constant 1.000000e-30 : f32
    %847 = vector.broadcast %cst_268 : f32 to vector<2x1024xf32>
    %848 = arith.select %846, %847, %843 : vector<2x1024xi1>, vector<2x1024xf32>
    %849 = tpu.reciprocal %848 {approx = true} : vector<2x1024xf32> -> vector<2x1024xf32>
    %850 = arith.mulf %848, %849 : vector<2x1024xf32>
    %cst_269 = arith.constant 2.000000e+00 : f32
    %851 = vector.broadcast %cst_269 : f32 to vector<2x1024xf32>
    %852 = arith.subf %851, %850 : vector<2x1024xf32>
    %853 = arith.mulf %849, %852 : vector<2x1024xf32>
    %854 = tpu.reciprocal %834 {approx = true} : vector<2x1024xf32> -> vector<2x1024xf32>
    %855 = arith.mulf %834, %854 : vector<2x1024xf32>
    %cst_270 = arith.constant 2.000000e+00 : f32
    %856 = vector.broadcast %cst_270 : f32 to vector<2x1024xf32>
    %857 = arith.subf %856, %855 : vector<2x1024xf32>
    %858 = arith.mulf %854, %857 : vector<2x1024xf32>
    %859 = arith.mulf %840, %858 : vector<2x1024xf32>
    %cst_271 = arith.constant 1.000000e+00 : f32
    %860 = vector.broadcast %cst_271 : f32 to vector<2x1024xf32>
    %861 = arith.addf %860, %859 : vector<2x1024xf32>
    %862 = math.absf %861 : vector<2x1024xf32>
    %cst_272 = arith.constant 1.000000e-30 : f32
    %863 = vector.broadcast %cst_272 : f32 to vector<2x1024xf32>
    %864 = arith.cmpf olt, %862, %863 : vector<2x1024xf32>
    %cst_273 = arith.constant 1.000000e-30 : f32
    %865 = vector.broadcast %cst_273 : f32 to vector<2x1024xf32>
    %866 = arith.select %864, %865, %861 : vector<2x1024xi1>, vector<2x1024xf32>
    %867 = arith.mulf %836, %853 : vector<2x1024xf32>
    %868 = arith.mulf %867, %866 : vector<2x1024xf32>
    %cst_274 = arith.constant -0.221783042 : f32
    %cst_275 = arith.constant -0.220907897 : f32
    %869 = vector.broadcast %cst_274 : f32 to vector<2x1024xf32>
    %870 = vector.broadcast %cst_275 : f32 to vector<2x1024xf32>
    %871 = arith.select %8, %869, %870 : vector<2x1024xi1>, vector<2x1024xf32>
    %872 = arith.mulf %871, %19 : vector<2x1024xf32>
    %873 = arith.mulf %872, %853 : vector<2x1024xf32>
    %cst_276 = arith.constant 1.000000e+00 : f32
    %874 = vector.broadcast %cst_276 : f32 to vector<2x1024xf32>
    %875 = arith.addf %874, %873 : vector<2x1024xf32>
    %876 = math.absf %875 : vector<2x1024xf32>
    %cst_277 = arith.constant 1.000000e-30 : f32
    %877 = vector.broadcast %cst_277 : f32 to vector<2x1024xf32>
    %878 = arith.cmpf olt, %876, %877 : vector<2x1024xf32>
    %cst_278 = arith.constant 1.000000e-30 : f32
    %879 = vector.broadcast %cst_278 : f32 to vector<2x1024xf32>
    %880 = arith.select %878, %879, %875 : vector<2x1024xi1>, vector<2x1024xf32>
    %881 = tpu.reciprocal %880 {approx = true} : vector<2x1024xf32> -> vector<2x1024xf32>
    %882 = arith.mulf %880, %881 : vector<2x1024xf32>
    %cst_279 = arith.constant 2.000000e+00 : f32
    %883 = vector.broadcast %cst_279 : f32 to vector<2x1024xf32>
    %884 = arith.subf %883, %882 : vector<2x1024xf32>
    %885 = arith.mulf %881, %884 : vector<2x1024xf32>
    %886 = tpu.reciprocal %866 {approx = true} : vector<2x1024xf32> -> vector<2x1024xf32>
    %887 = arith.mulf %866, %886 : vector<2x1024xf32>
    %cst_280 = arith.constant 2.000000e+00 : f32
    %888 = vector.broadcast %cst_280 : f32 to vector<2x1024xf32>
    %889 = arith.subf %888, %887 : vector<2x1024xf32>
    %890 = arith.mulf %886, %889 : vector<2x1024xf32>
    %891 = arith.mulf %872, %890 : vector<2x1024xf32>
    %cst_281 = arith.constant 1.000000e+00 : f32
    %892 = vector.broadcast %cst_281 : f32 to vector<2x1024xf32>
    %893 = arith.addf %892, %891 : vector<2x1024xf32>
    %894 = math.absf %893 : vector<2x1024xf32>
    %cst_282 = arith.constant 1.000000e-30 : f32
    %895 = vector.broadcast %cst_282 : f32 to vector<2x1024xf32>
    %896 = arith.cmpf olt, %894, %895 : vector<2x1024xf32>
    %cst_283 = arith.constant 1.000000e-30 : f32
    %897 = vector.broadcast %cst_283 : f32 to vector<2x1024xf32>
    %898 = arith.select %896, %897, %893 : vector<2x1024xi1>, vector<2x1024xf32>
    %899 = arith.mulf %868, %885 : vector<2x1024xf32>
    %900 = arith.mulf %899, %898 : vector<2x1024xf32>
    %cst_284 = arith.constant -2.786210e-01 : f32
    %cst_285 = arith.constant -0.278816938 : f32
    %901 = vector.broadcast %cst_284 : f32 to vector<2x1024xf32>
    %902 = vector.broadcast %cst_285 : f32 to vector<2x1024xf32>
    %903 = arith.select %8, %901, %902 : vector<2x1024xi1>, vector<2x1024xf32>
    %904 = arith.mulf %903, %19 : vector<2x1024xf32>
    %905 = arith.mulf %904, %885 : vector<2x1024xf32>
    %cst_286 = arith.constant 1.000000e+00 : f32
    %906 = vector.broadcast %cst_286 : f32 to vector<2x1024xf32>
    %907 = arith.addf %906, %905 : vector<2x1024xf32>
    %908 = math.absf %907 : vector<2x1024xf32>
    %cst_287 = arith.constant 1.000000e-30 : f32
    %909 = vector.broadcast %cst_287 : f32 to vector<2x1024xf32>
    %910 = arith.cmpf olt, %908, %909 : vector<2x1024xf32>
    %cst_288 = arith.constant 1.000000e-30 : f32
    %911 = vector.broadcast %cst_288 : f32 to vector<2x1024xf32>
    %912 = arith.select %910, %911, %907 : vector<2x1024xi1>, vector<2x1024xf32>
    %913 = tpu.reciprocal %912 {approx = true} : vector<2x1024xf32> -> vector<2x1024xf32>
    %914 = arith.mulf %912, %913 : vector<2x1024xf32>
    %cst_289 = arith.constant 2.000000e+00 : f32
    %915 = vector.broadcast %cst_289 : f32 to vector<2x1024xf32>
    %916 = arith.subf %915, %914 : vector<2x1024xf32>
    %917 = arith.mulf %913, %916 : vector<2x1024xf32>
    %918 = tpu.reciprocal %898 {approx = true} : vector<2x1024xf32> -> vector<2x1024xf32>
    %919 = arith.mulf %898, %918 : vector<2x1024xf32>
    %cst_290 = arith.constant 2.000000e+00 : f32
    %920 = vector.broadcast %cst_290 : f32 to vector<2x1024xf32>
    %921 = arith.subf %920, %919 : vector<2x1024xf32>
    %922 = arith.mulf %918, %921 : vector<2x1024xf32>
    %923 = arith.mulf %904, %922 : vector<2x1024xf32>
    %cst_291 = arith.constant 1.000000e+00 : f32
    %924 = vector.broadcast %cst_291 : f32 to vector<2x1024xf32>
    %925 = arith.addf %924, %923 : vector<2x1024xf32>
    %926 = math.absf %925 : vector<2x1024xf32>
    %cst_292 = arith.constant 1.000000e-30 : f32
    %927 = vector.broadcast %cst_292 : f32 to vector<2x1024xf32>
    %928 = arith.cmpf olt, %926, %927 : vector<2x1024xf32>
    %cst_293 = arith.constant 1.000000e-30 : f32
    %929 = vector.broadcast %cst_293 : f32 to vector<2x1024xf32>
    %930 = arith.select %928, %929, %925 : vector<2x1024xi1>, vector<2x1024xf32>
    %931 = arith.mulf %900, %917 : vector<2x1024xf32>
    %932 = arith.mulf %931, %930 : vector<2x1024xf32>
    %cst_294 = arith.constant -0.223570287 : f32
    %cst_295 = arith.constant -0.222804785 : f32
    %933 = vector.broadcast %cst_294 : f32 to vector<2x1024xf32>
    %934 = vector.broadcast %cst_295 : f32 to vector<2x1024xf32>
    %935 = arith.select %8, %933, %934 : vector<2x1024xi1>, vector<2x1024xf32>
    %936 = arith.mulf %935, %19 : vector<2x1024xf32>
    %937 = arith.mulf %936, %917 : vector<2x1024xf32>
    %cst_296 = arith.constant 1.000000e+00 : f32
    %938 = vector.broadcast %cst_296 : f32 to vector<2x1024xf32>
    %939 = arith.addf %938, %937 : vector<2x1024xf32>
    %940 = math.absf %939 : vector<2x1024xf32>
    %cst_297 = arith.constant 1.000000e-30 : f32
    %941 = vector.broadcast %cst_297 : f32 to vector<2x1024xf32>
    %942 = arith.cmpf olt, %940, %941 : vector<2x1024xf32>
    %cst_298 = arith.constant 1.000000e-30 : f32
    %943 = vector.broadcast %cst_298 : f32 to vector<2x1024xf32>
    %944 = arith.select %942, %943, %939 : vector<2x1024xi1>, vector<2x1024xf32>
    %945 = tpu.reciprocal %944 {approx = true} : vector<2x1024xf32> -> vector<2x1024xf32>
    %946 = arith.mulf %944, %945 : vector<2x1024xf32>
    %cst_299 = arith.constant 2.000000e+00 : f32
    %947 = vector.broadcast %cst_299 : f32 to vector<2x1024xf32>
    %948 = arith.subf %947, %946 : vector<2x1024xf32>
    %949 = arith.mulf %945, %948 : vector<2x1024xf32>
    %950 = tpu.reciprocal %930 {approx = true} : vector<2x1024xf32> -> vector<2x1024xf32>
    %951 = arith.mulf %930, %950 : vector<2x1024xf32>
    %cst_300 = arith.constant 2.000000e+00 : f32
    %952 = vector.broadcast %cst_300 : f32 to vector<2x1024xf32>
    %953 = arith.subf %952, %951 : vector<2x1024xf32>
    %954 = arith.mulf %950, %953 : vector<2x1024xf32>
    %955 = arith.mulf %936, %954 : vector<2x1024xf32>
    %cst_301 = arith.constant 1.000000e+00 : f32
    %956 = vector.broadcast %cst_301 : f32 to vector<2x1024xf32>
    %957 = arith.addf %956, %955 : vector<2x1024xf32>
    %958 = math.absf %957 : vector<2x1024xf32>
    %cst_302 = arith.constant 1.000000e-30 : f32
    %959 = vector.broadcast %cst_302 : f32 to vector<2x1024xf32>
    %960 = arith.cmpf olt, %958, %959 : vector<2x1024xf32>
    %cst_303 = arith.constant 1.000000e-30 : f32
    %961 = vector.broadcast %cst_303 : f32 to vector<2x1024xf32>
    %962 = arith.select %960, %961, %957 : vector<2x1024xi1>, vector<2x1024xf32>
    %963 = arith.mulf %932, %949 : vector<2x1024xf32>
    %964 = arith.mulf %963, %962 : vector<2x1024xf32>
    %cst_304 = arith.constant -0.276783794 : f32
    %cst_305 = arith.constant -0.276954651 : f32
    %965 = vector.broadcast %cst_304 : f32 to vector<2x1024xf32>
    %966 = vector.broadcast %cst_305 : f32 to vector<2x1024xf32>
    %967 = arith.select %8, %965, %966 : vector<2x1024xi1>, vector<2x1024xf32>
    %968 = arith.mulf %967, %19 : vector<2x1024xf32>
    %969 = arith.mulf %968, %949 : vector<2x1024xf32>
    %cst_306 = arith.constant 1.000000e+00 : f32
    %970 = vector.broadcast %cst_306 : f32 to vector<2x1024xf32>
    %971 = arith.addf %970, %969 : vector<2x1024xf32>
    %972 = math.absf %971 : vector<2x1024xf32>
    %cst_307 = arith.constant 1.000000e-30 : f32
    %973 = vector.broadcast %cst_307 : f32 to vector<2x1024xf32>
    %974 = arith.cmpf olt, %972, %973 : vector<2x1024xf32>
    %cst_308 = arith.constant 1.000000e-30 : f32
    %975 = vector.broadcast %cst_308 : f32 to vector<2x1024xf32>
    %976 = arith.select %974, %975, %971 : vector<2x1024xi1>, vector<2x1024xf32>
    %977 = tpu.reciprocal %976 {approx = true} : vector<2x1024xf32> -> vector<2x1024xf32>
    %978 = arith.mulf %976, %977 : vector<2x1024xf32>
    %cst_309 = arith.constant 2.000000e+00 : f32
    %979 = vector.broadcast %cst_309 : f32 to vector<2x1024xf32>
    %980 = arith.subf %979, %978 : vector<2x1024xf32>
    %981 = arith.mulf %977, %980 : vector<2x1024xf32>
    %982 = tpu.reciprocal %962 {approx = true} : vector<2x1024xf32> -> vector<2x1024xf32>
    %983 = arith.mulf %962, %982 : vector<2x1024xf32>
    %cst_310 = arith.constant 2.000000e+00 : f32
    %984 = vector.broadcast %cst_310 : f32 to vector<2x1024xf32>
    %985 = arith.subf %984, %983 : vector<2x1024xf32>
    %986 = arith.mulf %982, %985 : vector<2x1024xf32>
    %987 = arith.mulf %968, %986 : vector<2x1024xf32>
    %cst_311 = arith.constant 1.000000e+00 : f32
    %988 = vector.broadcast %cst_311 : f32 to vector<2x1024xf32>
    %989 = arith.addf %988, %987 : vector<2x1024xf32>
    %990 = math.absf %989 : vector<2x1024xf32>
    %cst_312 = arith.constant 1.000000e-30 : f32
    %991 = vector.broadcast %cst_312 : f32 to vector<2x1024xf32>
    %992 = arith.cmpf olt, %990, %991 : vector<2x1024xf32>
    %cst_313 = arith.constant 1.000000e-30 : f32
    %993 = vector.broadcast %cst_313 : f32 to vector<2x1024xf32>
    %994 = arith.select %992, %993, %989 : vector<2x1024xi1>, vector<2x1024xf32>
    %995 = arith.mulf %964, %981 : vector<2x1024xf32>
    %996 = arith.mulf %995, %994 : vector<2x1024xf32>
    %997 = arith.mulf %18, %996 : vector<2x1024xf32>
    %cst_314 = arith.constant 0.740818202 : f32
    %cst_315 = arith.constant 1.22140276 : f32
    %998 = vector.broadcast %cst_314 : f32 to vector<2x1024xf32>
    %999 = vector.broadcast %cst_315 : f32 to vector<2x1024xf32>
    %1000 = arith.select %8, %998, %999 : vector<2x1024xi1>, vector<2x1024xf32>
    %1001 = arith.mulf %997, %1000 : vector<2x1024xf32>
    %cst_316 = arith.constant 1.000000e+00 : f32
    %1002 = vector.broadcast %cst_316 : f32 to vector<2x1024xf32>
    %1003 = arith.subf %1002, %1001 : vector<2x1024xf32>
    %1004 = arith.select %8, %1001, %1003 : vector<2x1024xi1>, vector<2x1024xf32>
    %cst_317 = arith.constant 0.000000e+00 : f32
    %1005 = vector.broadcast %cst_317 : f32 to vector<2x1024xf32>
    %1006 = arith.cmpf ole, %0, %1005 : vector<2x1024xf32>
    %cst_318 = arith.constant 0.000000e+00 : f32
    %1007 = vector.broadcast %cst_318 : f32 to vector<2x1024xf32>
    %1008 = arith.select %1006, %1007, %1004 : vector<2x1024xi1>, vector<2x1024xf32>
    %cst_319 = arith.constant 1.000000e+00 : f32
    %1009 = vector.broadcast %cst_319 : f32 to vector<2x1024xf32>
    %1010 = arith.cmpf oge, %0, %1009 : vector<2x1024xf32>
    %cst_320 = arith.constant 1.000000e+00 : f32
    %1011 = vector.broadcast %cst_320 : f32 to vector<2x1024xf32>
    %1012 = arith.select %1010, %1011, %1008 : vector<2x1024xi1>, vector<2x1024xf32>
    %cst_321 = arith.constant 1.64872122 : f32
    %1013 = vector.broadcast %cst_321 : f32 to vector<2x1024xf32>
    %1014 = arith.mulf %1013, %1012 : vector<2x1024xf32>
    %c0_322 = arith.constant 0 : index
    %c0_323 = arith.constant 0 : index
    %1015 = vector.load %arg2[%c0_322, %c0_323] : memref<2x1024xf32, #tpu.memory_space<vmem>>, vector<2x1024xf32>
    tpu.vector_store %arg2[%c0_322, %c0_323], %1014 {strides = array<i32>} : memref<2x1024xf32, #tpu.memory_space<vmem>>, vector<2x1024xf32>,
    return
  }
  func.func @transform_0(%arg0: i32) -> (i32, i32) {
    %c0_i32 = arith.constant 0 : i32
    %c0_i32_0 = arith.constant 0 : i32
    return %arg0, %c0_i32 : i32, i32
  }
  func.func @transform_1(%arg0: i32) -> (i32, i32) {
    %c0_i32 = arith.constant 0 : i32
    %c0_i32_0 = arith.constant 0 : i32
    return %arg0, %c0_i32 : i32, i32
  }
}

</mosaic_0001>

<llo_original>
// kernel: tpu_custom_call.1
$region0: #{tpu_custom_call.1}
  #allocation0 [shape = 'u32[]', space=smem, size = 0x4, offset = 0x4, fixed_abs, tag = 'smem constant byte address 0x4 - core index']
  #allocation1 [shape = 'u32[144,128]{1,0:T(1,128)}', space=vmem, size = 0x12000, scoped, tag = 'internal scratch']
  %s0 = inlined_call_operand.hbm [shape: f32[2,1024], index: 0, kind: input, shape index: {}]
  %s1 = inlined_call_operand.hbm [shape: f32[2,1024], index: 1, kind: output, shape index: {}]
  %s2 = sld [smem:[#allocation0]]
  $region18: #{tpu_custom_call.1} parent=0
    _
  %s4 = ssub.s32 1, %s2
  %s5 = scalar_select 0, %s4, %s2
  $region1: #{tpu_custom_call.1} parent=0
    #allocation2 [shape = 'u8[8192]{0}', space=vmem, size = 0x2000, scoped, tag = 'input window, operand 0, single buffered']
    #allocation3 [shape = 's32[1]{0}', space=sflag, size = 0x4, scoped, tag = 'scoped memory for tpu_custom_call.1']
    #allocation4 [shape = 's32[1]{0}', space=sflag, size = 0x4, scoped, tag = 'scoped memory for tpu_custom_call.1']
    #allocation5 [shape = 'u8[8192]{0}', space=vmem, size = 0x2000, scoped, tag = 'output window, operand 0, single buffered']
    %6 = vsyncpa [#allocation3], 0
    %7 = vsyncpa [#allocation4], 0
    // Predicated region
    $region2: #{tpu_custom_call.1} parent=1 // pred_check
      _
    $region3: #{tpu_custom_call.1} parent=1 // pred_check_branch
      %9 = sbr.rel (0) target = $region5
    $region4: #{tpu_custom_call.1} parent=1 // pred_region
      %s11 = ssub.s32 256, 256
      %12 = vsyncadd [#allocation3], %s11
      %s14 = sshll.u32 [#allocation2], 4
      %s15 = int_to_ptr.vmem [resolvable:$true] %s14
      %17 = dma.hbm_to_vmem [thread:$0]  %s0, 256, %s15, [#allocation3]
    $region5: #{tpu_custom_call.1} parent=1 // pred_fallthru
      _
    // Predicated region
    $region6: #{tpu_custom_call.1} parent=1 // pred_check
      _
    $region7: #{tpu_custom_call.1} parent=1 // pred_check_branch
      %19 = sbr.rel (0) target = $region9
    $region8: #{tpu_custom_call.1} parent=1 // pred_region
      %20 = dma.done [#allocation3], 256
    $region9: #{tpu_custom_call.1} parent=1 // pred_fallthru
      _
    %v21 = vld [vmem:[#allocation2] sm:$0xff]
    %v22 = vld [vmem:[#allocation2 + $0x8] sm:$0xff]
    %v23 = vmax.f32 %v21, 1e-30
    %v24 = vmax.f32 %v22, 1e-30
    %v25 = vmin.f32 %v23, 0.9999999
    %v26 = vmin.f32 %v24, 0.9999999
    %v27 = vsub.f32 1.0, %v25
    %v28 = vsub.f32 1.0, %v26
    %vm29 = vcmp.lt.f32.partialorder %v21, 0.563706
    %vm30 = vcmp.lt.f32.partialorder %v22, 0.563706
    %v31 = vlog2.pop %v25
    %v32 = vmul.f32 %v31, 0.6931472
    %v33 = vlog2.pop %v26
    %v34 = vmul.f32 %v33, 0.6931472
    %v35 = vmul.f32 %v32, 1.3498588
    %v36 = vmul.f32 %v34, 1.3498588
    %v37 = vlog2.pop %v27
    %v38 = vmul.f32 %v37, 0.6931472
    %v39 = vlog2.pop %v28
    %v40 = vmul.f32 %v39, 0.6931472
    %v41 = vmul.f32 %v38, 0.8187308
    %v42 = vmul.f32 %v40, 0.8187308
    %v43 = vadd.f32 %v35, %v41
    %v44 = vadd.f32 %v36, %v42
    %v45 = vsub.f32 %v43, -0.06097713
    %v46 = vsub.f32 %v44, -0.06097713
    %v47 = vmul.f32 %v45, 1.442695
    %v48 = vpow.pop %v47
    %v49 = vmul.f32 %v46, 1.442695
    %v50 = vpow.pop %v49
    %v51 = vsel %vm29, %v25, %v27
    %v52 = vsel %vm30, %v26, %v28
    %v53 = vsel %vm29, -0.9228595, -1.1923642
    %v54 = vsel %vm30, -0.9228595, -1.1923642
    %v55 = vmul.f32 %v53, %v51
    %v56 = vmul.f32 %v54, %v52
    %v57 = vadd.f32 %v55, 1.0
    %v58 = vadd.f32 %v56, 1.0
    %v59 = vand.u32 2147483647, %v57
    %v60 = vand.u32 2147483647, %v58
    %vm61 = vcmp.lt.f32.partialorder %v59, 1e-30
    %vm62 = vcmp.lt.f32.partialorder %v60, 1e-30
    %v63 = vsel %vm61, 1e-30, %v57
    %v64 = vsel %vm62, 1e-30, %v58
    %v65 = vrcp.pop %v63
    %v66 = vrcp.pop %v64
    %v67 = vmul.f32 %v63, %v65
    %v68 = vmul.f32 %v64, %v66
    %v69 = vsub.f32 2.0, %v67
    %v70 = vsub.f32 2.0, %v68
    %v71 = vmul.f32 %v65, %v69
    %v72 = vmul.f32 %v66, %v70
    %v73 = vsel %vm29, -0.02302798, 0.06824499
    %v74 = vsel %vm30, -0.02302798, 0.06824499
    %v75 = vmul.f32 %v73, %v51
    %v76 = vmul.f32 %v74, %v52
    %v77 = vmul.f32 %v75, %v71
    %v78 = vmul.f32 %v76, %v72
    %v79 = vadd.f32 %v77, 1.0
    %v80 = vadd.f32 %v78, 1.0
    %v81 = vand.u32 2147483647, %v79
    %v82 = vand.u32 2147483647, %v80
    %vm83 = vcmp.lt.f32.partialorder %v81, 1e-30
    %vm84 = vcmp.lt.f32.partialorder %v82, 1e-30
    %v85 = vsel %vm83, 1e-30, %v79
    %v86 = vsel %vm84, 1e-30, %v80
    %v87 = vrcp.pop %v85
    %v88 = vrcp.pop %v86
    %v89 = vmul.f32 %v85, %v87
    %v90 = vmul.f32 %v86, %v88
    %v91 = vsub.f32 2.0, %v89
    %v92 = vsub.f32 2.0, %v90
    %v93 = vmul.f32 %v87, %v91
    %v94 = vmul.f32 %v88, %v92
    %v95 = vrcp.pop 1.0
    %v96 = vsub.f32 2.0, %v95
    %v97 = vmul.f32 %v95, %v96
    %v98 = vmul.f32 %v75, %v97
    %v99 = vmul.f32 %v76, %v97
    %v100 = vadd.f32 %v98, 1.0
    %v101 = vadd.f32 %v99, 1.0
    %v102 = vand.u32 2147483647, %v100
    %v103 = vand.u32 2147483647, %v101
    %vm104 = vcmp.lt.f32.partialorder %v102, 1e-30
    %vm105 = vcmp.lt.f32.partialorder %v103, 1e-30
    %v106 = vsel %vm104, 1e-30, %v100
    %v107 = vsel %vm105, 1e-30, %v101
    %v108 = vmul.f32 %v71, %v93
    %v109 = vmul.f32 %v72, %v94
    %v110 = vmul.f32 %v108, %v106
    %v111 = vmul.f32 %v109, %v107
    %v112 = vsel %vm29, -0.5109826, -0.5353795
    %v113 = vsel %vm30, -0.5109826, -0.5353795
    %v114 = vmul.f32 %v112, %v51
    %v115 = vmul.f32 %v113, %v52
    %v116 = vmul.f32 %v114, %v93
    %v117 = vmul.f32 %v115, %v94
    %v118 = vadd.f32 %v116, 1.0
    %v119 = vadd.f32 %v117, 1.0
    %v120 = vand.u32 2147483647, %v118
    %v121 = vand.u32 2147483647, %v119
    %vm122 = vcmp.lt.f32.partialorder %v120, 1e-30
    %vm123 = vcmp.lt.f32.partialorder %v121, 1e-30
    %v124 = vsel %vm122, 1e-30, %v118
    %v125 = vsel %vm123, 1e-30, %v119
    %v126 = vrcp.pop %v124
    %v127 = vrcp.pop %v125
    %v128 = vmul.f32 %v124, %v126
    %v129 = vmul.f32 %v125, %v127
    %v130 = vsub.f32 2.0, %v128
    %v131 = vsub.f32 2.0, %v129
    %v132 = vmul.f32 %v126, %v130
    %v133 = vmul.f32 %v127, %v131
    %v134 = vrcp.pop %v106
    %v135 = vrcp.pop %v107
    %v136 = vmul.f32 %v106, %v134
    %v137 = vmul.f32 %v107, %v135
    %v138 = vsub.f32 2.0, %v136
    %v139 = vsub.f32 2.0, %v137
    %v140 = vmul.f32 %v134, %v138
    %v141 = vmul.f32 %v135, %v139
    %v142 = vmul.f32 %v114, %v140
    %v143 = vmul.f32 %v115, %v141
    %v144 = vadd.f32 %v142, 1.0
    %v145 = vadd.f32 %v143, 1.0
    %v146 = vand.u32 2147483647, %v144
    %v147 = vand.u32 2147483647, %v145
    %vm148 = vcmp.lt.f32.partialorder %v146, 1e-30
    %vm149 = vcmp.lt.f32.partialorder %v147, 1e-30
    %v150 = vsel %vm148, 1e-30, %v144
    %v151 = vsel %vm149, 1e-30, %v145
    %v152 = vmul.f32 %v110, %v132
    %v153 = vmul.f32 %v111, %v133
    %v154 = vmul.f32 %v152, %v150
    %v155 = vmul.f32 %v153, %v151
    %v156 = vsel %vm29, -0.10152229, -0.07066201
    %v157 = vsel %vm30, -0.10152229, -0.07066201
    %v158 = vmul.f32 %v156, %v51
    %v159 = vmul.f32 %v157, %v52
    %v160 = vmul.f32 %v158, %v132
    %v161 = vmul.f32 %v159, %v133
    %v162 = vadd.f32 %v160, 1.0
    %v163 = vadd.f32 %v161, 1.0
    %v164 = vand.u32 2147483647, %v162
    %v165 = vand.u32 2147483647, %v163
    %vm166 = vcmp.lt.f32.partialorder %v164, 1e-30
    %vm167 = vcmp.lt.f32.partialorder %v165, 1e-30
    %v168 = vsel %vm166, 1e-30, %v162
    %v169 = vsel %vm167, 1e-30, %v163
    %v170 = vrcp.pop %v168
    %v171 = vrcp.pop %v169
    %v172 = vmul.f32 %v168, %v170
    %v173 = vmul.f32 %v169, %v171
    %v174 = vsub.f32 2.0, %v172
    %v175 = vsub.f32 2.0, %v173
    %v176 = vmul.f32 %v170, %v174
    %v177 = vmul.f32 %v171, %v175
    %v178 = vrcp.pop %v150
    %v179 = vrcp.pop %v151
    %v180 = vmul.f32 %v150, %v178
    %v181 = vmul.f32 %v151, %v179
    %v182 = vsub.f32 2.0, %v180
    %v183 = vsub.f32 2.0, %v181
    %v184 = vmul.f32 %v178, %v182
    %v185 = vmul.f32 %v179, %v183
    %v186 = vmul.f32 %v158, %v184
    %v187 = vmul.f32 %v159, %v185
    %v188 = vadd.f32 %v186, 1.0
    %v189 = vadd.f32 %v187, 1.0
    %v190 = vand.u32 2147483647, %v188
    %v191 = vand.u32 2147483647, %v189
    %vm192 = vcmp.lt.f32.partialorder %v190, 1e-30
    %vm193 = vcmp.lt.f32.partialorder %v191, 1e-30
    %v194 = vsel %vm192, 1e-30, %v188
    %v195 = vsel %vm193, 1e-30, %v189
    %v196 = vmul.f32 %v154, %v176
    %v197 = vmul.f32 %v155, %v177
    %v198 = vmul.f32 %v196, %v194
    %v199 = vmul.f32 %v197, %v195
    %v200 = vsel %vm29, -0.41106382, -0.41906542
    %v201 = vsel %vm30, -0.41106382, -0.41906542
    %v202 = vmul.f32 %v200, %v51
    %v203 = vmul.f32 %v201, %v52
    %v204 = vmul.f32 %v202, %v176
    %v205 = vmul.f32 %v203, %v177
    %v206 = vadd.f32 %v204, 1.0
    %v207 = vadd.f32 %v205, 1.0
    %v208 = vand.u32 2147483647, %v206
    %v209 = vand.u32 2147483647, %v207
    %vm210 = vcmp.lt.f32.partialorder %v208, 1e-30
    %vm211 = vcmp.lt.f32.partialorder %v209, 1e-30
    %v212 = vsel %vm210, 1e-30, %v206
    %v213 = vsel %vm211, 1e-30, %v207
    %v214 = vrcp.pop %v212
    %v215 = vrcp.pop %v213
    %v216 = vmul.f32 %v212, %v214
    %v217 = vmul.f32 %v213, %v215
    %v218 = vsub.f32 2.0, %v216
    %v219 = vsub.f32 2.0, %v217
    %v220 = vmul.f32 %v214, %v218
    %v221 = vmul.f32 %v215, %v219
    %v222 = vrcp.pop %v194
    %v223 = vrcp.pop %v195
    %v224 = vmul.f32 %v194, %v222
    %v225 = vmul.f32 %v195, %v223
    %v226 = vsub.f32 2.0, %v224
    %v227 = vsub.f32 2.0, %v225
    %v228 = vmul.f32 %v222, %v226
    %v229 = vmul.f32 %v223, %v227
    %v230 = vmul.f32 %v202, %v228
    %v231 = vmul.f32 %v203, %v229
    %v232 = vadd.f32 %v230, 1.0
    %v233 = vadd.f32 %v231, 1.0
    %v234 = vand.u32 2147483647, %v232
    %v235 = vand.u32 2147483647, %v233
    %vm236 = vcmp.lt.f32.partialorder %v234, 1e-30
    %vm237 = vcmp.lt.f32.partialorder %v235, 1e-30
    %v238 = vsel %vm236, 1e-30, %v232
    %v239 = vsel %vm237, 1e-30, %v233
    %v240 = vmul.f32 %v198, %v220
    %v241 = vmul.f32 %v199, %v221
    %v242 = vmul.f32 %v240, %v238
    %v243 = vmul.f32 %v241, %v239
    %v244 = vsel %vm29, -0.14021273, -0.12477011
    %v245 = vsel %vm30, -0.14021273, -0.12477011
    %v246 = vmul.f32 %v244, %v51
    %v247 = vmul.f32 %v245, %v52
    %v248 = vmul.f32 %v246, %v220
    %v249 = vmul.f32 %v247, %v221
    %v250 = vadd.f32 %v248, 1.0
    %v251 = vadd.f32 %v249, 1.0
    %v252 = vand.u32 2147483647, %v250
    %v253 = vand.u32 2147483647, %v251
    %vm254 = vcmp.lt.f32.partialorder %v252, 1e-30
    %vm255 = vcmp.lt.f32.partialorder %v253, 1e-30
    %v256 = vsel %vm254, 1e-30, %v250
    %v257 = vsel %vm255, 1e-30, %v251
    %v258 = vrcp.pop %v256
    %v259 = vrcp.pop %v257
    %v260 = vmul.f32 %v256, %v258
    %v261 = vmul.f32 %v257, %v259
    %v262 = vsub.f32 2.0, %v260
    %v263 = vsub.f32 2.0, %v261
    %v264 = vmul.f32 %v258, %v262
    %v265 = vmul.f32 %v259, %v263
    %v266 = vrcp.pop %v238
    %v267 = vrcp.pop %v239
    %v268 = vmul.f32 %v238, %v266
    %v269 = vmul.f32 %v239, %v267
    %v270 = vsub.f32 2.0, %v268
    %v271 = vsub.f32 2.0, %v269
    %v272 = vmul.f32 %v266, %v270
    %v273 = vmul.f32 %v267, %v271
    %v274 = vmul.f32 %v246, %v272
    %v275 = vmul.f32 %v247, %v273
    %v276 = vadd.f32 %v274, 1.0
    %v277 = vadd.f32 %v275, 1.0
    %v278 = vand.u32 2147483647, %v276
    %v279 = vand.u32 2147483647, %v277
    %vm280 = vcmp.lt.f32.partialorder %v278, 1e-30
    %vm281 = vcmp.lt.f32.partialorder %v279, 1e-30
    %v282 = vsel %vm280, 1e-30, %v276
    %v283 = vsel %vm281, 1e-30, %v277
    %v284 = vmul.f32 %v242, %v264
    %v285 = vmul.f32 %v243, %v265
    %v286 = vmul.f32 %v284, %v282
    %v287 = vmul.f32 %v285, %v283
    %v288 = vsel %vm29, -0.366344, -0.37021267
    %v289 = vsel %vm30, -0.366344, -0.37021267
    %v290 = vmul.f32 %v288, %v51
    %v291 = vmul.f32 %v289, %v52
    %v292 = vmul.f32 %v290, %v264
    %v293 = vmul.f32 %v291, %v265
    %v294 = vadd.f32 %v292, 1.0
    %v295 = vadd.f32 %v293, 1.0
    %v296 = vand.u32 2147483647, %v294
    %v297 = vand.u32 2147483647, %v295
    %vm298 = vcmp.lt.f32.partialorder %v296, 1e-30
    %vm299 = vcmp.lt.f32.partialorder %v297, 1e-30
    %v300 = vsel %vm298, 1e-30, %v294
    %v301 = vsel %vm299, 1e-30, %v295
    %v302 = vrcp.pop %v300
    %v303 = vrcp.pop %v301
    %v304 = vmul.f32 %v300, %v302
    %v305 = vmul.f32 %v301, %v303
    %v306 = vsub.f32 2.0, %v304
    %v307 = vsub.f32 2.0, %v305
    %v308 = vmul.f32 %v302, %v306
    %v309 = vmul.f32 %v303, %v307
    %v310 = vrcp.pop %v282
    %v311 = vrcp.pop %v283
    %v312 = vmul.f32 %v282, %v310
    %v313 = vmul.f32 %v283, %v311
    %v314 = vsub.f32 2.0, %v312
    %v315 = vsub.f32 2.0, %v313
    %v316 = vmul.f32 %v310, %v314
    %v317 = vmul.f32 %v311, %v315
    %v318 = vmul.f32 %v290, %v316
    %v319 = vmul.f32 %v291, %v317
    %v320 = vadd.f32 %v318, 1.0
    %v321 = vadd.f32 %v319, 1.0
    %v322 = vand.u32 2147483647, %v320
    %v323 = vand.u32 2147483647, %v321
    %vm324 = vcmp.lt.f32.partialorder %v322, 1e-30
    %vm325 = vcmp.lt.f32.partialorder %v323, 1e-30
    %v326 = vsel %vm324, 1e-30, %v320
    %v327 = vsel %vm325, 1e-30, %v321
    %v328 = vmul.f32 %v286, %v308
    %v329 = vmul.f32 %v287, %v309
    %v330 = vmul.f32 %v328, %v326
    %v331 = vmul.f32 %v329, %v327
    %v332 = vsel %vm29, -0.16299573, -0.15373993
    %v333 = vsel %vm30, -0.16299573, -0.15373993
    %v334 = vmul.f32 %v332, %v51
    %v335 = vmul.f32 %v333, %v52
    %v336 = vmul.f32 %v334, %v308
    %v337 = vmul.f32 %v335, %v309
    %v338 = vadd.f32 %v336, 1.0
    %v339 = vadd.f32 %v337, 1.0
    %v340 = vand.u32 2147483647, %v338
    %v341 = vand.u32 2147483647, %v339
    %vm342 = vcmp.lt.f32.partialorder %v340, 1e-30
    %vm343 = vcmp.lt.f32.partialorder %v341, 1e-30
    %v344 = vsel %vm342, 1e-30, %v338
    %v345 = vsel %vm343, 1e-30, %v339
    %v346 = vrcp.pop %v344
    %v347 = vrcp.pop %v345
    %v348 = vmul.f32 %v344, %v346
    %v349 = vmul.f32 %v345, %v347
    %v350 = vsub.f32 2.0, %v348
    %v351 = vsub.f32 2.0, %v349
    %v352 = vmul.f32 %v346, %v350
    %v353 = vmul.f32 %v347, %v351
    %v354 = vrcp.pop %v326
    %v355 = vrcp.pop %v327
    %v356 = vmul.f32 %v326, %v354
    %v357 = vmul.f32 %v327, %v355
    %v358 = vsub.f32 2.0, %v356
    %v359 = vsub.f32 2.0, %v357
    %v360 = vmul.f32 %v354, %v358
    %v361 = vmul.f32 %v355, %v359
    %v362 = vmul.f32 %v334, %v360
    %v363 = vmul.f32 %v335, %v361
    %v364 = vadd.f32 %v362, 1.0
    %v365 = vadd.f32 %v363, 1.0
    %v366 = vand.u32 2147483647, %v364
    %v367 = vand.u32 2147483647, %v365
    %vm368 = vcmp.lt.f32.partialorder %v366, 1e-30
    %vm369 = vcmp.lt.f32.partialorder %v367, 1e-30
    %v370 = vsel %vm368, 1e-30, %v364
    %v371 = vsel %vm369, 1e-30, %v365
    %v372 = vmul.f32 %v330, %v352
    %v373 = vmul.f32 %v331, %v353
    %v374 = vmul.f32 %v372, %v370
    %v375 = vmul.f32 %v373, %v371
    %v376 = vsel %vm29, -0.34102696, -0.34328678
    %v377 = vsel %vm30, -0.34102696, -0.34328678
    %v378 = vmul.f32 %v376, %v51
    %v379 = vmul.f32 %v377, %v52
    %v380 = vmul.f32 %v378, %v352
    %v381 = vmul.f32 %v379, %v353
    %v382 = vadd.f32 %v380, 1.0
    %v383 = vadd.f32 %v381, 1.0
    %v384 = vand.u32 2147483647, %v382
    %v385 = vand.u32 2147483647, %v383
    %vm386 = vcmp.lt.f32.partialorder %v384, 1e-30
    %vm387 = vcmp.lt.f32.partialorder %v385, 1e-30
    %v388 = vsel %vm386, 1e-30, %v382
    %v389 = vsel %vm387, 1e-30, %v383
    %v390 = vrcp.pop %v388
    %v391 = vrcp.pop %v389
    %v392 = vmul.f32 %v388, %v390
    %v393 = vmul.f32 %v389, %v391
    %v394 = vsub.f32 2.0, %v392
    %v395 = vsub.f32 2.0, %v393
    %v396 = vmul.f32 %v390, %v394
    %v397 = vmul.f32 %v391, %v395
    %v398 = vrcp.pop %v370
    %v399 = vrcp.pop %v371
    %v400 = vmul.f32 %v370, %v398
    %v401 = vmul.f32 %v371, %v399
    %v402 = vsub.f32 2.0, %v400
    %v403 = vsub.f32 2.0, %v401
    %v404 = vmul.f32 %v398, %v402
    %v405 = vmul.f32 %v399, %v403
    %v406 = vmul.f32 %v378, %v404
    %v407 = vmul.f32 %v379, %v405
    %v408 = vadd.f32 %v406, 1.0
    %v409 = vadd.f32 %v407, 1.0
    %v410 = vand.u32 2147483647, %v408
    %v411 = vand.u32 2147483647, %v409
    %vm412 = vcmp.lt.f32.partialorder %v410, 1e-30
    %vm413 = vcmp.lt.f32.partialorder %v411, 1e-30
    %v414 = vsel %vm412, 1e-30, %v408
    %v415 = vsel %vm413, 1e-30, %v409
    %v416 = vmul.f32 %v374, %v396
    %v417 = vmul.f32 %v375, %v397
    %v418 = vmul.f32 %v416, %v414
    %v419 = vmul.f32 %v417, %v415
    %v420 = vsel %vm29, -0.17797264, -0.17180982
    %v421 = vsel %vm30, -0.17797264, -0.17180982
    %v422 = vmul.f32 %v420, %v51
    %v423 = vmul.f32 %v421, %v52
    %v424 = vmul.f32 %v422, %v396
    %v425 = vmul.f32 %v423, %v397
    %v426 = vadd.f32 %v424, 1.0
    %v427 = vadd.f32 %v425, 1.0
    %v428 = vand.u32 2147483647, %v426
    %v429 = vand.u32 2147483647, %v427
    %vm430 = vcmp.lt.f32.partialorder %v428, 1e-30
    %vm431 = vcmp.lt.f32.partialorder %v429, 1e-30
    %v432 = vsel %vm430, 1e-30, %v426
    %v433 = vsel %vm431, 1e-30, %v427
    %v434 = vrcp.pop %v432
    %v435 = vrcp.pop %v433
    %v436 = vmul.f32 %v432, %v434
    %v437 = vmul.f32 %v433, %v435
    %v438 = vsub.f32 2.0, %v436
    %v439 = vsub.f32 2.0, %v437
    %v440 = vmul.f32 %v434, %v438
    %v441 = vmul.f32 %v435, %v439
    %v442 = vrcp.pop %v414
    %v443 = vrcp.pop %v415
    %v444 = vmul.f32 %v414, %v442
    %v445 = vmul.f32 %v415, %v443
    %v446 = vsub.f32 2.0, %v444
    %v447 = vsub.f32 2.0, %v445
    %v448 = vmul.f32 %v442, %v446
    %v449 = vmul.f32 %v443, %v447
    %v450 = vmul.f32 %v422, %v448
    %v451 = vmul.f32 %v423, %v449
    %v452 = vadd.f32 %v450, 1.0
    %v453 = vadd.f32 %v451, 1.0
    %v454 = vand.u32 2147483647, %v452
    %v455 = vand.u32 2147483647, %v453
    %vm456 = vcmp.lt.f32.partialorder %v454, 1e-30
    %vm457 = vcmp.lt.f32.partialorder %v455, 1e-30
    %v458 = vsel %vm456, 1e-30, %v452
    %v459 = vsel %vm457, 1e-30, %v453
    %v460 = vmul.f32 %v418, %v440
    %v461 = vmul.f32 %v419, %v441
    %v462 = vmul.f32 %v460, %v458
    %v463 = vmul.f32 %v461, %v459
    %v464 = vsel %vm29, -0.32474715, -0.3262232
    %v465 = vsel %vm30, -0.32474715, -0.3262232
    %v466 = vmul.f32 %v464, %v51
    %v467 = vmul.f32 %v465, %v52
    %v468 = vmul.f32 %v466, %v440
    %v469 = vmul.f32 %v467, %v441
    %v470 = vadd.f32 %v468, 1.0
    %v471 = vadd.f32 %v469, 1.0
    %v472 = vand.u32 2147483647, %v470
    %v473 = vand.u32 2147483647, %v471
    %vm474 = vcmp.lt.f32.partialorder %v472, 1e-30
    %vm475 = vcmp.lt.f32.partialorder %v473, 1e-30
    %v476 = vsel %vm474, 1e-30, %v470
    %v477 = vsel %vm475, 1e-30, %v471
    %v478 = vrcp.pop %v476
    %v479 = vrcp.pop %v477
    %v480 = vmul.f32 %v476, %v478
    %v481 = vmul.f32 %v477, %v479
    %v482 = vsub.f32 2.0, %v480
    %v483 = vsub.f32 2.0, %v481
    %v484 = vmul.f32 %v478, %v482
    %v485 = vmul.f32 %v479, %v483
    %v486 = vrcp.pop %v458
    %v487 = vrcp.pop %v459
    %v488 = vmul.f32 %v458, %v486
    %v489 = vmul.f32 %v459, %v487
    %v490 = vsub.f32 2.0, %v488
    %v491 = vsub.f32 2.0, %v489
    %v492 = vmul.f32 %v486, %v490
    %v493 = vmul.f32 %v487, %v491
    %v494 = vmul.f32 %v466, %v492
    %v495 = vmul.f32 %v467, %v493
    %v496 = vadd.f32 %v494, 1.0
    %v497 = vadd.f32 %v495, 1.0
    %v498 = vand.u32 2147483647, %v496
    %v499 = vand.u32 2147483647, %v497
    %vm500 = vcmp.lt.f32.partialorder %v498, 1e-30
    %vm501 = vcmp.lt.f32.partialorder %v499, 1e-30
    %v502 = vsel %vm500, 1e-30, %v496
    %v503 = vsel %vm501, 1e-30, %v497
    %v504 = vmul.f32 %v462, %v484
    %v505 = vmul.f32 %v463, %v485
    %v506 = vmul.f32 %v504, %v502
    %v507 = vmul.f32 %v505, %v503
    %v508 = vsel %vm29, -0.18855964, -0.18416263
    %v509 = vsel %vm30, -0.18855964, -0.18416263
    %v510 = vmul.f32 %v508, %v51
    %v511 = vmul.f32 %v509, %v52
    %v512 = vmul.f32 %v510, %v484
    %v513 = vmul.f32 %v511, %v485
    %v514 = vadd.f32 %v512, 1.0
    %v515 = vadd.f32 %v513, 1.0
    %v516 = vand.u32 2147483647, %v514
    %v517 = vand.u32 2147483647, %v515
    %vm518 = vcmp.lt.f32.partialorder %v516, 1e-30
    %vm519 = vcmp.lt.f32.partialorder %v517, 1e-30
    %v520 = vsel %vm518, 1e-30, %v514
    %v521 = vsel %vm519, 1e-30, %v515
    %v522 = vrcp.pop %v520
    %v523 = vrcp.pop %v521
    %v524 = vmul.f32 %v520, %v522
    %v525 = vmul.f32 %v521, %v523
    %v526 = vsub.f32 2.0, %v524
    %v527 = vsub.f32 2.0, %v525
    %v528 = vmul.f32 %v522, %v526
    %v529 = vmul.f32 %v523, %v527
    %v530 = vrcp.pop %v502
    %v531 = vrcp.pop %v503
    %v532 = vmul.f32 %v502, %v530
    %v533 = vmul.f32 %v503, %v531
    %v534 = vsub.f32 2.0, %v532
    %v535 = vsub.f32 2.0, %v533
    %v536 = vmul.f32 %v530, %v534
    %v537 = vmul.f32 %v531, %v535
    %v538 = vmul.f32 %v510, %v536
    %v539 = vmul.f32 %v511, %v537
    %v540 = vadd.f32 %v538, 1.0
    %v541 = vadd.f32 %v539, 1.0
    %v542 = vand.u32 2147483647, %v540
    %v543 = vand.u32 2147483647, %v541
    %vm544 = vcmp.lt.f32.partialorder %v542, 1e-30
    %vm545 = vcmp.lt.f32.partialorder %v543, 1e-30
    %v546 = vsel %vm544, 1e-30, %v540
    %v547 = vsel %vm545, 1e-30, %v541
    %v548 = vmul.f32 %v506, %v528
    %v549 = vmul.f32 %v507, %v529
    %v550 = vmul.f32 %v548, %v546
    %v551 = vmul.f32 %v549, %v547
    %v552 = vsel %vm29, -0.313402, -0.31443974
    %v553 = vsel %vm30, -0.313402, -0.31443974
    %v554 = vmul.f32 %v552, %v51
    %v555 = vmul.f32 %v553, %v52
    %v556 = vmul.f32 %v554, %v528
    %v557 = vmul.f32 %v555, %v529
    %v558 = vadd.f32 %v556, 1.0
    %v559 = vadd.f32 %v557, 1.0
    %v560 = vand.u32 2147483647, %v558
    %v561 = vand.u32 2147483647, %v559
    %vm562 = vcmp.lt.f32.partialorder %v560, 1e-30
    %vm563 = vcmp.lt.f32.partialorder %v561, 1e-30
    %v564 = vsel %vm562, 1e-30, %v558
    %v565 = vsel %vm563, 1e-30, %v559
    %v566 = vrcp.pop %v564
    %v567 = vrcp.pop %v565
    %v568 = vmul.f32 %v564, %v566
    %v569 = vmul.f32 %v565, %v567
    %v570 = vsub.f32 2.0, %v568
    %v571 = vsub.f32 2.0, %v569
    %v572 = vmul.f32 %v566, %v570
    %v573 = vmul.f32 %v567, %v571
    %v574 = vrcp.pop %v546
    %v575 = vrcp.pop %v547
    %v576 = vmul.f32 %v546, %v574
    %v577 = vmul.f32 %v547, %v575
    %v578 = vsub.f32 2.0, %v576
    %v579 = vsub.f32 2.0, %v577
    %v580 = vmul.f32 %v574, %v578
    %v581 = vmul.f32 %v575, %v579
    %v582 = vmul.f32 %v554, %v580
    %v583 = vmul.f32 %v555, %v581
    %v584 = vadd.f32 %v582, 1.0
    %v585 = vadd.f32 %v583, 1.0
    %v586 = vand.u32 2147483647, %v584
    %v587 = vand.u32 2147483647, %v585
    %vm588 = vcmp.lt.f32.partialorder %v586, 1e-30
    %vm589 = vcmp.lt.f32.partialorder %v587, 1e-30
    %v590 = vsel %vm588, 1e-30, %v584
    %v591 = vsel %vm589, 1e-30, %v585
    %v592 = vmul.f32 %v550, %v572
    %v593 = vmul.f32 %v551, %v573
    %v594 = vmul.f32 %v592, %v590
    %v595 = vmul.f32 %v593, %v591
    %v596 = vsel %vm29, -0.19643718, -0.19314265
    %v597 = vsel %vm30, -0.19643718, -0.19314265
    %v598 = vmul.f32 %v596, %v51
    %v599 = vmul.f32 %v597, %v52
    %v600 = vmul.f32 %v598, %v572
    %v601 = vmul.f32 %v599, %v573
    %v602 = vadd.f32 %v600, 1.0
    %v603 = vadd.f32 %v601, 1.0
    %v604 = vand.u32 2147483647, %v602
    %v605 = vand.u32 2147483647, %v603
    %vm606 = vcmp.lt.f32.partialorder %v604, 1e-30
    %vm607 = vcmp.lt.f32.partialorder %v605, 1e-30
    %v608 = vsel %vm606, 1e-30, %v602
    %v609 = vsel %vm607, 1e-30, %v603
    %v610 = vrcp.pop %v608
    %v611 = vrcp.pop %v609
    %v612 = vmul.f32 %v608, %v610
    %v613 = vmul.f32 %v609, %v611
    %v614 = vsub.f32 2.0, %v612
    %v615 = vsub.f32 2.0, %v613
    %v616 = vmul.f32 %v610, %v614
    %v617 = vmul.f32 %v611, %v615
    %v618 = vrcp.pop %v590
    %v619 = vrcp.pop %v591
    %v620 = vmul.f32 %v590, %v618
    %v621 = vmul.f32 %v591, %v619
    %v622 = vsub.f32 2.0, %v620
    %v623 = vsub.f32 2.0, %v621
    %v624 = vmul.f32 %v618, %v622
    %v625 = vmul.f32 %v619, %v623
    %v626 = vmul.f32 %v598, %v624
    %v627 = vmul.f32 %v599, %v625
    %v628 = vadd.f32 %v626, 1.0
    %v629 = vadd.f32 %v627, 1.0
    %v630 = vand.u32 2147483647, %v628
    %v631 = vand.u32 2147483647, %v629
    %vm632 = vcmp.lt.f32.partialorder %v630, 1e-30
    %vm633 = vcmp.lt.f32.partialorder %v631, 1e-30
    %v634 = vsel %vm632, 1e-30, %v628
    %v635 = vsel %vm633, 1e-30, %v629
    %v636 = vmul.f32 %v594, %v616
    %v637 = vmul.f32 %v595, %v617
    %v638 = vmul.f32 %v636, %v634
    %v639 = vmul.f32 %v637, %v635
    %v640 = vsel %vm29, -0.30504456, -0.30581313
    %v641 = vsel %vm30, -0.30504456, -0.30581313
    %v642 = vmul.f32 %v640, %v51
    %v643 = vmul.f32 %v641, %v52
    %v644 = vmul.f32 %v642, %v616
    %v645 = vmul.f32 %v643, %v617
    %v646 = vadd.f32 %v644, 1.0
    %v647 = vadd.f32 %v645, 1.0
    %v648 = vand.u32 2147483647, %v646
    %v649 = vand.u32 2147483647, %v647
    %vm650 = vcmp.lt.f32.partialorder %v648, 1e-30
    %vm651 = vcmp.lt.f32.partialorder %v649, 1e-30
    %v652 = vsel %vm650, 1e-30, %v646
    %v653 = vsel %vm651, 1e-30, %v647
    %v654 = vrcp.pop %v652
    %v655 = vrcp.pop %v653
    %v656 = vmul.f32 %v652, %v654
    %v657 = vmul.f32 %v653, %v655
    %v658 = vsub.f32 2.0, %v656
    %v659 = vsub.f32 2.0, %v657
    %v660 = vmul.f32 %v654, %v658
    %v661 = vmul.f32 %v655, %v659
    %v662 = vrcp.pop %v634
    %v663 = vrcp.pop %v635
    %v664 = vmul.f32 %v634, %v662
    %v665 = vmul.f32 %v635, %v663
    %v666 = vsub.f32 2.0, %v664
    %v667 = vsub.f32 2.0, %v665
    %v668 = vmul.f32 %v662, %v666
    %v669 = vmul.f32 %v663, %v667
    %v670 = vmul.f32 %v642, %v668
    %v671 = vmul.f32 %v643, %v669
    %v672 = vadd.f32 %v670, 1.0
    %v673 = vadd.f32 %v671, 1.0
    %v674 = vand.u32 2147483647, %v672
    %v675 = vand.u32 2147483647, %v673
    %vm676 = vcmp.lt.f32.partialorder %v674, 1e-30
    %vm677 = vcmp.lt.f32.partialorder %v675, 1e-30
    %v678 = vsel %vm676, 1e-30, %v672
    %v679 = vsel %vm677, 1e-30, %v673
    %v680 = vmul.f32 %v638, %v660
    %v681 = vmul.f32 %v639, %v661
    %v682 = vmul.f32 %v680, %v678
    %v683 = vmul.f32 %v681, %v679
    %v684 = vsel %vm29, -0.20252621, -0.19996592
    %v685 = vsel %vm30, -0.20252621, -0.19996592
    %v686 = vmul.f32 %v684, %v51
    %v687 = vmul.f32 %v685, %v52
    %v688 = vmul.f32 %v686, %v660
    %v689 = vmul.f32 %v687, %v661
    %v690 = vadd.f32 %v688, 1.0
    %v691 = vadd.f32 %v689, 1.0
    %v692 = vand.u32 2147483647, %v690
    %v693 = vand.u32 2147483647, %v691
    %vm694 = vcmp.lt.f32.partialorder %v692, 1e-30
    %vm695 = vcmp.lt.f32.partialorder %v693, 1e-30
    %v696 = vsel %vm694, 1e-30, %v690
    %v697 = vsel %vm695, 1e-30, %v691
    %v698 = vrcp.pop %v696
    %v699 = vrcp.pop %v697
    %v700 = vmul.f32 %v696, %v698
    %v701 = vmul.f32 %v697, %v699
    %v702 = vsub.f32 2.0, %v700
    %v703 = vsub.f32 2.0, %v701
    %v704 = vmul.f32 %v698, %v702
    %v705 = vmul.f32 %v699, %v703
    %v706 = vrcp.pop %v678
    %v707 = vrcp.pop %v679
    %v708 = vmul.f32 %v678, %v706
    %v709 = vmul.f32 %v679, %v707
    %v710 = vsub.f32 2.0, %v708
    %v711 = vsub.f32 2.0, %v709
    %v712 = vmul.f32 %v706, %v710
    %v713 = vmul.f32 %v707, %v711
    %v714 = vmul.f32 %v686, %v712
    %v715 = vmul.f32 %v687, %v713
    %v716 = vadd.f32 %v714, 1.0
    %v717 = vadd.f32 %v715, 1.0
    %v718 = vand.u32 2147483647, %v716
    %v719 = vand.u32 2147483647, %v717
    %vm720 = vcmp.lt.f32.partialorder %v718, 1e-30
    %vm721 = vcmp.lt.f32.partialorder %v719, 1e-30
    %v722 = vsel %vm720, 1e-30, %v716
    %v723 = vsel %vm721, 1e-30, %v717
    %v724 = vmul.f32 %v682, %v704
    %v725 = vmul.f32 %v683, %v705
    %v726 = vmul.f32 %v724, %v722
    %v727 = vmul.f32 %v725, %v723
    %v728 = vsel %vm29, -0.29863253, -0.29922426
    %v729 = vsel %vm30, -0.29863253, -0.29922426
    %v730 = vmul.f32 %v728, %v51
    %v731 = vmul.f32 %v729, %v52
    %v732 = vmul.f32 %v730, %v704
    %v733 = vmul.f32 %v731, %v705
    %v734 = vadd.f32 %v732, 1.0
    %v735 = vadd.f32 %v733, 1.0
    %v736 = vand.u32 2147483647, %v734
    %v737 = vand.u32 2147483647, %v735
    %vm738 = vcmp.lt.f32.partialorder %v736, 1e-30
    %vm739 = vcmp.lt.f32.partialorder %v737, 1e-30
    %v740 = vsel %vm738, 1e-30, %v734
    %v741 = vsel %vm739, 1e-30, %v735
    %v742 = vrcp.pop %v740
    %v743 = vrcp.pop %v741
    %v744 = vmul.f32 %v740, %v742
    %v745 = vmul.f32 %v741, %v743
    %v746 = vsub.f32 2.0, %v744
    %v747 = vsub.f32 2.0, %v745
    %v748 = vmul.f32 %v742, %v746
    %v749 = vmul.f32 %v743, %v747
    %v750 = vrcp.pop %v722
    %v751 = vrcp.pop %v723
    %v752 = vmul.f32 %v722, %v750
    %v753 = vmul.f32 %v723, %v751
    %v754 = vsub.f32 2.0, %v752
    %v755 = vsub.f32 2.0, %v753
    %v756 = vmul.f32 %v750, %v754
    %v757 = vmul.f32 %v751, %v755
    %v758 = vmul.f32 %v730, %v756
    %v759 = vmul.f32 %v731, %v757
    %v760 = vadd.f32 %v758, 1.0
    %v761 = vadd.f32 %v759, 1.0
    %v762 = vand.u32 2147483647, %v760
    %v763 = vand.u32 2147483647, %v761
    %vm764 = vcmp.lt.f32.partialorder %v762, 1e-30
    %vm765 = vcmp.lt.f32.partialorder %v763, 1e-30
    %v766 = vsel %vm764, 1e-30, %v760
    %v767 = vsel %vm765, 1e-30, %v761
    %v768 = vmul.f32 %v726, %v748
    %v769 = vmul.f32 %v727, %v749
    %v770 = vmul.f32 %v768, %v766
    %v771 = vmul.f32 %v769, %v767
    %v772 = vsel %vm29, -0.20737322, -0.20532644
    %v773 = vsel %vm30, -0.20737322, -0.20532644
    %v774 = vmul.f32 %v772, %v51
    %v775 = vmul.f32 %v773, %v52
    %v776 = vmul.f32 %v774, %v748
    %v777 = vmul.f32 %v775, %v749
    %v778 = vadd.f32 %v776, 1.0
    %v779 = vadd.f32 %v777, 1.0
    %v780 = vand.u32 2147483647, %v778
    %v781 = vand.u32 2147483647, %v779
    %vm782 = vcmp.lt.f32.partialorder %v780, 1e-30
    %vm783 = vcmp.lt.f32.partialorder %v781, 1e-30
    %v784 = vsel %vm782, 1e-30, %v778
    %v785 = vsel %vm783, 1e-30, %v779
    %v786 = vrcp.pop %v784
    %v787 = vrcp.pop %v785
    %v788 = vmul.f32 %v784, %v786
    %v789 = vmul.f32 %v785, %v787
    %v790 = vsub.f32 2.0, %v788
    %v791 = vsub.f32 2.0, %v789
    %v792 = vmul.f32 %v786, %v790
    %v793 = vmul.f32 %v787, %v791
    %v794 = vrcp.pop %v766
    %v795 = vrcp.pop %v767
    %v796 = vmul.f32 %v766, %v794
    %v797 = vmul.f32 %v767, %v795
    %v798 = vsub.f32 2.0, %v796
    %v799 = vsub.f32 2.0, %v797
    %v800 = vmul.f32 %v794, %v798
    %v801 = vmul.f32 %v795, %v799
    %v802 = vmul.f32 %v774, %v800
    %v803 = vmul.f32 %v775, %v801
    %v804 = vadd.f32 %v802, 1.0
    %v805 = vadd.f32 %v803, 1.0
    %v806 = vand.u32 2147483647, %v804
    %v807 = vand.u32 2147483647, %v805
    %vm808 = vcmp.lt.f32.partialorder %v806, 1e-30
    %vm809 = vcmp.lt.f32.partialorder %v807, 1e-30
    %v810 = vsel %vm808, 1e-30, %v804
    %v811 = vsel %vm809, 1e-30, %v805
    %v812 = vmul.f32 %v770, %v792
    %v813 = vmul.f32 %v771, %v793
    %v814 = vmul.f32 %v812, %v810
    %v815 = vmul.f32 %v813, %v811
    %v816 = vsel %vm29, -0.29355776, -0.2940272
    %v817 = vsel %vm30, -0.29355776, -0.2940272
    %v818 = vmul.f32 %v816, %v51
    %v819 = vmul.f32 %v817, %v52
    %v820 = vmul.f32 %v818, %v792
    %v821 = vmul.f32 %v819, %v793
    %v822 = vadd.f32 %v820, 1.0
    %v823 = vadd.f32 %v821, 1.0
    %v824 = vand.u32 2147483647, %v822
    %v825 = vand.u32 2147483647, %v823
    %vm826 = vcmp.lt.f32.partialorder %v824, 1e-30
    %vm827 = vcmp.lt.f32.partialorder %v825, 1e-30
    %v828 = vsel %vm826, 1e-30, %v822
    %v829 = vsel %vm827, 1e-30, %v823
    %v830 = vrcp.pop %v828
    %v831 = vrcp.pop %v829
    %v832 = vmul.f32 %v828, %v830
    %v833 = vmul.f32 %v829, %v831
    %v834 = vsub.f32 2.0, %v832
    %v835 = vsub.f32 2.0, %v833
    %v836 = vmul.f32 %v830, %v834
    %v837 = vmul.f32 %v831, %v835
    %v838 = vrcp.pop %v810
    %v839 = vrcp.pop %v811
    %v840 = vmul.f32 %v810, %v838
    %v841 = vmul.f32 %v811, %v839
    %v842 = vsub.f32 2.0, %v840
    %v843 = vsub.f32 2.0, %v841
    %v844 = vmul.f32 %v838, %v842
    %v845 = vmul.f32 %v839, %v843
    %v846 = vmul.f32 %v818, %v844
    %v847 = vmul.f32 %v819, %v845
    %v848 = vadd.f32 %v846, 1.0
    %v849 = vadd.f32 %v847, 1.0
    %v850 = vand.u32 2147483647, %v848
    %v851 = vand.u32 2147483647, %v849
    %vm852 = vcmp.lt.f32.partialorder %v850, 1e-30
    %vm853 = vcmp.lt.f32.partialorder %v851, 1e-30
    %v854 = vsel %vm852, 1e-30, %v848
    %v855 = vsel %vm853, 1e-30, %v849
    %v856 = vmul.f32 %v814, %v836
    %v857 = vmul.f32 %v815, %v837
    %v858 = vmul.f32 %v856, %v854
    %v859 = vmul.f32 %v857, %v855
    %v860 = vsel %vm29, -0.21132278, -0.20964915
    %v861 = vsel %vm30, -0.21132278, -0.20964915
    %v862 = vmul.f32 %v860, %v51
    %v863 = vmul.f32 %v861, %v52
    %v864 = vmul.f32 %v862, %v836
    %v865 = vmul.f32 %v863, %v837
    %v866 = vadd.f32 %v864, 1.0
    %v867 = vadd.f32 %v865, 1.0
    %v868 = vand.u32 2147483647, %v866
    %v869 = vand.u32 2147483647, %v867
    %vm870 = vcmp.lt.f32.partialorder %v868, 1e-30
    %vm871 = vcmp.lt.f32.partialorder %v869, 1e-30
    %v872 = vsel %vm870, 1e-30, %v866
    %v873 = vsel %vm871, 1e-30, %v867
    %v874 = vrcp.pop %v872
    %v875 = vrcp.pop %v873
    %v876 = vmul.f32 %v872, %v874
    %v877 = vmul.f32 %v873, %v875
    %v878 = vsub.f32 2.0, %v876
    %v879 = vsub.f32 2.0, %v877
    %v880 = vmul.f32 %v874, %v878
    %v881 = vmul.f32 %v875, %v879
    %v882 = vrcp.pop %v854
    %v883 = vrcp.pop %v855
    %v884 = vmul.f32 %v854, %v882
    %v885 = vmul.f32 %v855, %v883
    %v886 = vsub.f32 2.0, %v884
    %v887 = vsub.f32 2.0, %v885
    %v888 = vmul.f32 %v882, %v886
    %v889 = vmul.f32 %v883, %v887
    %v890 = vmul.f32 %v862, %v888
    %v891 = vmul.f32 %v863, %v889
    %v892 = vadd.f32 %v890, 1.0
    %v893 = vadd.f32 %v891, 1.0
    %v894 = vand.u32 2147483647, %v892
    %v895 = vand.u32 2147483647, %v893
    %vm896 = vcmp.lt.f32.partialorder %v894, 1e-30
    %vm897 = vcmp.lt.f32.partialorder %v895, 1e-30
    %v898 = vsel %vm896, 1e-30, %v892
    %v899 = vsel %vm897, 1e-30, %v893
    %v900 = vmul.f32 %v858, %v880
    %v901 = vmul.f32 %v859, %v881
    %v902 = vmul.f32 %v900, %v898
    %v903 = vmul.f32 %v901, %v899
    %v904 = vsel %vm29, -0.2894416, -0.289823
    %v905 = vsel %vm30, -0.2894416, -0.289823
    %v906 = vmul.f32 %v904, %v51
    %v907 = vmul.f32 %v905, %v52
    %v908 = vmul.f32 %v906, %v880
    %v909 = vmul.f32 %v907, %v881
    %v910 = vadd.f32 %v908, 1.0
    %v911 = vadd.f32 %v909, 1.0
    %v912 = vand.u32 2147483647, %v910
    %v913 = vand.u32 2147483647, %v911
    %vm914 = vcmp.lt.f32.partialorder %v912, 1e-30
    %vm915 = vcmp.lt.f32.partialorder %v913, 1e-30
    %v916 = vsel %vm914, 1e-30, %v910
    %v917 = vsel %vm915, 1e-30, %v911
    %v918 = vrcp.pop %v916
    %v919 = vrcp.pop %v917
    %v920 = vmul.f32 %v916, %v918
    %v921 = vmul.f32 %v917, %v919
    %v922 = vsub.f32 2.0, %v920
    %v923 = vsub.f32 2.0, %v921
    %v924 = vmul.f32 %v918, %v922
    %v925 = vmul.f32 %v919, %v923
    %v926 = vrcp.pop %v898
    %v927 = vrcp.pop %v899
    %v928 = vmul.f32 %v898, %v926
    %v929 = vmul.f32 %v899, %v927
    %v930 = vsub.f32 2.0, %v928
    %v931 = vsub.f32 2.0, %v929
    %v932 = vmul.f32 %v926, %v930
    %v933 = vmul.f32 %v927, %v931
    %v934 = vmul.f32 %v906, %v932
    %v935 = vmul.f32 %v907, %v933
    %v936 = vadd.f32 %v934, 1.0
    %v937 = vadd.f32 %v935, 1.0
    %v938 = vand.u32 2147483647, %v936
    %v939 = vand.u32 2147483647, %v937
    %vm940 = vcmp.lt.f32.partialorder %v938, 1e-30
    %vm941 = vcmp.lt.f32.partialorder %v939, 1e-30
    %v942 = vsel %vm940, 1e-30, %v936
    %v943 = vsel %vm941, 1e-30, %v937
    %v944 = vmul.f32 %v902, %v924
    %v945 = vmul.f32 %v903, %v925
    %v946 = vmul.f32 %v944, %v942
    %v947 = vmul.f32 %v945, %v943
    %v948 = vsel %vm29, -0.21460289, -0.21320893
    %v949 = vsel %vm30, -0.21460289, -0.21320893
    %v950 = vmul.f32 %v948, %v51
    %v951 = vmul.f32 %v949, %v52
    %v952 = vmul.f32 %v950, %v924
    %v953 = vmul.f32 %v951, %v925
    %v954 = vadd.f32 %v952, 1.0
    %v955 = vadd.f32 %v953, 1.0
    %v956 = vand.u32 2147483647, %v954
    %v957 = vand.u32 2147483647, %v955
    %vm958 = vcmp.lt.f32.partialorder %v956, 1e-30
    %vm959 = vcmp.lt.f32.partialorder %v957, 1e-30
    %v960 = vsel %vm958, 1e-30, %v954
    %v961 = vsel %vm959, 1e-30, %v955
    %v962 = vrcp.pop %v960
    %v963 = vrcp.pop %v961
    %v964 = vmul.f32 %v960, %v962
    %v965 = vmul.f32 %v961, %v963
    %v966 = vsub.f32 2.0, %v964
    %v967 = vsub.f32 2.0, %v965
    %v968 = vmul.f32 %v962, %v966
    %v969 = vmul.f32 %v963, %v967
    %v970 = vrcp.pop %v942
    %v971 = vrcp.pop %v943
    %v972 = vmul.f32 %v942, %v970
    %v973 = vmul.f32 %v943, %v971
    %v974 = vsub.f32 2.0, %v972
    %v975 = vsub.f32 2.0, %v973
    %v976 = vmul.f32 %v970, %v974
    %v977 = vmul.f32 %v971, %v975
    %v978 = vmul.f32 %v950, %v976
    %v979 = vmul.f32 %v951, %v977
    %v980 = vadd.f32 %v978, 1.0
    %v981 = vadd.f32 %v979, 1.0
    %v982 = vand.u32 2147483647, %v980
    %v983 = vand.u32 2147483647, %v981
    %vm984 = vcmp.lt.f32.partialorder %v982, 1e-30
    %vm985 = vcmp.lt.f32.partialorder %v983, 1e-30
    %v986 = vsel %vm984, 1e-30, %v980
    %v987 = vsel %vm985, 1e-30, %v981
    %v988 = vmul.f32 %v946, %v968
    %v989 = vmul.f32 %v947, %v969
    %v990 = vmul.f32 %v988, %v986
    %v991 = vmul.f32 %v989, %v987
    %v992 = vsel %vm29, -0.2860359, -0.28635186
    %v993 = vsel %vm30, -0.2860359, -0.28635186
    %v994 = vmul.f32 %v992, %v51
    %v995 = vmul.f32 %v993, %v52
    %v996 = vmul.f32 %v994, %v968
    %v997 = vmul.f32 %v995, %v969
    %v998 = vadd.f32 %v996, 1.0
    %v999 = vadd.f32 %v997, 1.0
    %v1000 = vand.u32 2147483647, %v998
    %v1001 = vand.u32 2147483647, %v999
    %vm1002 = vcmp.lt.f32.partialorder %v1000, 1e-30
    %vm1003 = vcmp.lt.f32.partialorder %v1001, 1e-30
    %v1004 = vsel %vm1002, 1e-30, %v998
    %v1005 = vsel %vm1003, 1e-30, %v999
    %v1006 = vrcp.pop %v1004
    %v1007 = vrcp.pop %v1005
    %v1008 = vmul.f32 %v1004, %v1006
    %v1009 = vmul.f32 %v1005, %v1007
    %v1010 = vsub.f32 2.0, %v1008
    %v1011 = vsub.f32 2.0, %v1009
    %v1012 = vmul.f32 %v1006, %v1010
    %v1013 = vmul.f32 %v1007, %v1011
    %v1014 = vrcp.pop %v986
    %v1015 = vrcp.pop %v987
    %v1016 = vmul.f32 %v986, %v1014
    %v1017 = vmul.f32 %v987, %v1015
    %v1018 = vsub.f32 2.0, %v1016
    %v1019 = vsub.f32 2.0, %v1017
    %v1020 = vmul.f32 %v1014, %v1018
    %v1021 = vmul.f32 %v1015, %v1019
    %v1022 = vmul.f32 %v994, %v1020
    %v1023 = vmul.f32 %v995, %v1021
    %v1024 = vadd.f32 %v1022, 1.0
    %v1025 = vadd.f32 %v1023, 1.0
    %v1026 = vand.u32 2147483647, %v1024
    %v1027 = vand.u32 2147483647, %v1025
    %vm1028 = vcmp.lt.f32.partialorder %v1026, 1e-30
    %vm1029 = vcmp.lt.f32.partialorder %v1027, 1e-30
    %v1030 = vsel %vm1028, 1e-30, %v1024
    %v1031 = vsel %vm1029, 1e-30, %v1025
    %v1032 = vmul.f32 %v990, %v1012
    %v1033 = vmul.f32 %v991, %v1013
    %v1034 = vmul.f32 %v1032, %v1030
    %v1035 = vmul.f32 %v1033, %v1031
    %v1036 = vsel %vm29, -0.21737038, -0.21619141
    %v1037 = vsel %vm30, -0.21737038, -0.21619141
    %v1038 = vmul.f32 %v1036, %v51
    %v1039 = vmul.f32 %v1037, %v52
    %v1040 = vmul.f32 %v1038, %v1012
    %v1041 = vmul.f32 %v1039, %v1013
    %v1042 = vadd.f32 %v1040, 1.0
    %v1043 = vadd.f32 %v1041, 1.0
    %v1044 = vand.u32 2147483647, %v1042
    %v1045 = vand.u32 2147483647, %v1043
    %vm1046 = vcmp.lt.f32.partialorder %v1044, 1e-30
    %vm1047 = vcmp.lt.f32.partialorder %v1045, 1e-30
    %v1048 = vsel %vm1046, 1e-30, %v1042
    %v1049 = vsel %vm1047, 1e-30, %v1043
    %v1050 = vrcp.pop %v1048
    %v1051 = vrcp.pop %v1049
    %v1052 = vmul.f32 %v1048, %v1050
    %v1053 = vmul.f32 %v1049, %v1051
    %v1054 = vsub.f32 2.0, %v1052
    %v1055 = vsub.f32 2.0, %v1053
    %v1056 = vmul.f32 %v1050, %v1054
    %v1057 = vmul.f32 %v1051, %v1055
    %v1058 = vrcp.pop %v1030
    %v1059 = vrcp.pop %v1031
    %v1060 = vmul.f32 %v1030, %v1058
    %v1061 = vmul.f32 %v1031, %v1059
    %v1062 = vsub.f32 2.0, %v1060
    %v1063 = vsub.f32 2.0, %v1061
    %v1064 = vmul.f32 %v1058, %v1062
    %v1065 = vmul.f32 %v1059, %v1063
    %v1066 = vmul.f32 %v1038, %v1064
    %v1067 = vmul.f32 %v1039, %v1065
    %v1068 = vadd.f32 %v1066, 1.0
    %v1069 = vadd.f32 %v1067, 1.0
    %v1070 = vand.u32 2147483647, %v1068
    %v1071 = vand.u32 2147483647, %v1069
    %vm1072 = vcmp.lt.f32.partialorder %v1070, 1e-30
    %vm1073 = vcmp.lt.f32.partialorder %v1071, 1e-30
    %v1074 = vsel %vm1072, 1e-30, %v1068
    %v1075 = vsel %vm1073, 1e-30, %v1069
    %v1076 = vmul.f32 %v1034, %v1056
    %v1077 = vmul.f32 %v1035, %v1057
    %v1078 = vmul.f32 %v1076, %v1074
    %v1079 = vmul.f32 %v1077, %v1075
    %v1080 = vsel %vm29, -0.28317145, -0.28343743
    %v1081 = vsel %vm30, -0.28317145, -0.28343743
    %v1082 = vmul.f32 %v1080, %v51
    %v1083 = vmul.f32 %v1081, %v52
    %v1084 = vmul.f32 %v1082, %v1056
    %v1085 = vmul.f32 %v1083, %v1057
    %v1086 = vadd.f32 %v1084, 1.0
    %v1087 = vadd.f32 %v1085, 1.0
    %v1088 = vand.u32 2147483647, %v1086
    %v1089 = vand.u32 2147483647, %v1087
    %vm1090 = vcmp.lt.f32.partialorder %v1088, 1e-30
    %vm1091 = vcmp.lt.f32.partialorder %v1089, 1e-30
    %v1092 = vsel %vm1090, 1e-30, %v1086
    %v1093 = vsel %vm1091, 1e-30, %v1087
    %v1094 = vrcp.pop %v1092
    %v1095 = vrcp.pop %v1093
    %v1096 = vmul.f32 %v1092, %v1094
    %v1097 = vmul.f32 %v1093, %v1095
    %v1098 = vsub.f32 2.0, %v1096
    %v1099 = vsub.f32 2.0, %v1097
    %v1100 = vmul.f32 %v1094, %v1098
    %v1101 = vmul.f32 %v1095, %v1099
    %v1102 = vrcp.pop %v1074
    %v1103 = vrcp.pop %v1075
    %v1104 = vmul.f32 %v1074, %v1102
    %v1105 = vmul.f32 %v1075, %v1103
    %v1106 = vsub.f32 2.0, %v1104
    %v1107 = vsub.f32 2.0, %v1105
    %v1108 = vmul.f32 %v1102, %v1106
    %v1109 = vmul.f32 %v1103, %v1107
    %v1110 = vmul.f32 %v1082, %v1108
    %v1111 = vmul.f32 %v1083, %v1109
    %v1112 = vadd.f32 %v1110, 1.0
    %v1113 = vadd.f32 %v1111, 1.0
    %v1114 = vand.u32 2147483647, %v1112
    %v1115 = vand.u32 2147483647, %v1113
    %vm1116 = vcmp.lt.f32.partialorder %v1114, 1e-30
    %vm1117 = vcmp.lt.f32.partialorder %v1115, 1e-30
    %v1118 = vsel %vm1116, 1e-30, %v1112
    %v1119 = vsel %vm1117, 1e-30, %v1113
    %v1120 = vmul.f32 %v1078, %v1100
    %v1121 = vmul.f32 %v1079, %v1101
    %v1122 = vmul.f32 %v1120, %v1118
    %v1123 = vmul.f32 %v1121, %v1119
    %v1124 = vsel %vm29, -0.21973665, -0.21872652
    %v1125 = vsel %vm30, -0.21973665, -0.21872652
    %v1126 = vmul.f32 %v1124, %v51
    %v1127 = vmul.f32 %v1125, %v52
    %v1128 = vmul.f32 %v1126, %v1100
    %v1129 = vmul.f32 %v1127, %v1101
    %v1130 = vadd.f32 %v1128, 1.0
    %v1131 = vadd.f32 %v1129, 1.0
    %v1132 = vand.u32 2147483647, %v1130
    %v1133 = vand.u32 2147483647, %v1131
    %vm1134 = vcmp.lt.f32.partialorder %v1132, 1e-30
    %vm1135 = vcmp.lt.f32.partialorder %v1133, 1e-30
    %v1136 = vsel %vm1134, 1e-30, %v1130
    %v1137 = vsel %vm1135, 1e-30, %v1131
    %v1138 = vrcp.pop %v1136
    %v1139 = vrcp.pop %v1137
    %v1140 = vmul.f32 %v1136, %v1138
    %v1141 = vmul.f32 %v1137, %v1139
    %v1142 = vsub.f32 2.0, %v1140
    %v1143 = vsub.f32 2.0, %v1141
    %v1144 = vmul.f32 %v1138, %v1142
    %v1145 = vmul.f32 %v1139, %v1143
    %v1146 = vrcp.pop %v1118
    %v1147 = vrcp.pop %v1119
    %v1148 = vmul.f32 %v1118, %v1146
    %v1149 = vmul.f32 %v1119, %v1147
    %v1150 = vsub.f32 2.0, %v1148
    %v1151 = vsub.f32 2.0, %v1149
    %v1152 = vmul.f32 %v1146, %v1150
    %v1153 = vmul.f32 %v1147, %v1151
    %v1154 = vmul.f32 %v1126, %v1152
    %v1155 = vmul.f32 %v1127, %v1153
    %v1156 = vadd.f32 %v1154, 1.0
    %v1157 = vadd.f32 %v1155, 1.0
    %v1158 = vand.u32 2147483647, %v1156
    %v1159 = vand.u32 2147483647, %v1157
    %vm1160 = vcmp.lt.f32.partialorder %v1158, 1e-30
    %vm1161 = vcmp.lt.f32.partialorder %v1159, 1e-30
    %v1162 = vsel %vm1160, 1e-30, %v1156
    %v1163 = vsel %vm1161, 1e-30, %v1157
    %v1164 = vmul.f32 %v1122, %v1144
    %v1165 = vmul.f32 %v1123, %v1145
    %v1166 = vmul.f32 %v1164, %v1162
    %v1167 = vmul.f32 %v1165, %v1163
    %v1168 = vsel %vm29, -0.28072873, -0.28095567
    %v1169 = vsel %vm30, -0.28072873, -0.28095567
    %v1170 = vmul.f32 %v1168, %v51
    %v1171 = vmul.f32 %v1169, %v52
    %v1172 = vmul.f32 %v1170, %v1144
    %v1173 = vmul.f32 %v1171, %v1145
    %v1174 = vadd.f32 %v1172, 1.0
    %v1175 = vadd.f32 %v1173, 1.0
    %v1176 = vand.u32 2147483647, %v1174
    %v1177 = vand.u32 2147483647, %v1175
    %vm1178 = vcmp.lt.f32.partialorder %v1176, 1e-30
    %vm1179 = vcmp.lt.f32.partialorder %v1177, 1e-30
    %v1180 = vsel %vm1178, 1e-30, %v1174
    %v1181 = vsel %vm1179, 1e-30, %v1175
    %v1182 = vrcp.pop %v1180
    %v1183 = vrcp.pop %v1181
    %v1184 = vmul.f32 %v1180, %v1182
    %v1185 = vmul.f32 %v1181, %v1183
    %v1186 = vsub.f32 2.0, %v1184
    %v1187 = vsub.f32 2.0, %v1185
    %v1188 = vmul.f32 %v1182, %v1186
    %v1189 = vmul.f32 %v1183, %v1187
    %v1190 = vrcp.pop %v1162
    %v1191 = vrcp.pop %v1163
    %v1192 = vmul.f32 %v1162, %v1190
    %v1193 = vmul.f32 %v1163, %v1191
    %v1194 = vsub.f32 2.0, %v1192
    %v1195 = vsub.f32 2.0, %v1193
    %v1196 = vmul.f32 %v1190, %v1194
    %v1197 = vmul.f32 %v1191, %v1195
    %v1198 = vmul.f32 %v1170, %v1196
    %v1199 = vmul.f32 %v1171, %v1197
    %v1200 = vadd.f32 %v1198, 1.0
    %v1201 = vadd.f32 %v1199, 1.0
    %v1202 = vand.u32 2147483647, %v1200
    %v1203 = vand.u32 2147483647, %v1201
    %vm1204 = vcmp.lt.f32.partialorder %v1202, 1e-30
    %vm1205 = vcmp.lt.f32.partialorder %v1203, 1e-30
    %v1206 = vsel %vm1204, 1e-30, %v1200
    %v1207 = vsel %vm1205, 1e-30, %v1201
    %v1208 = vmul.f32 %v1166, %v1188
    %v1209 = vmul.f32 %v1167, %v1189
    %v1210 = vmul.f32 %v1208, %v1206
    %v1211 = vmul.f32 %v1209, %v1207
    %v1212 = vsel %vm29, -0.22178304, -0.2209079
    %v1213 = vsel %vm30, -0.22178304, -0.2209079
    %v1214 = vmul.f32 %v1212, %v51
    %v1215 = vmul.f32 %v1213, %v52
    %v1216 = vmul.f32 %v1214, %v1188
    %v1217 = vmul.f32 %v1215, %v1189
    %v1218 = vadd.f32 %v1216, 1.0
    %v1219 = vadd.f32 %v1217, 1.0
    %v1220 = vand.u32 2147483647, %v1218
    %v1221 = vand.u32 2147483647, %v1219
    %vm1222 = vcmp.lt.f32.partialorder %v1220, 1e-30
    %vm1223 = vcmp.lt.f32.partialorder %v1221, 1e-30
    %v1224 = vsel %vm1222, 1e-30, %v1218
    %v1225 = vsel %vm1223, 1e-30, %v1219
    %v1226 = vrcp.pop %v1224
    %v1227 = vrcp.pop %v1225
    %v1228 = vmul.f32 %v1224, %v1226
    %v1229 = vmul.f32 %v1225, %v1227
    %v1230 = vsub.f32 2.0, %v1228
    %v1231 = vsub.f32 2.0, %v1229
    %v1232 = vmul.f32 %v1226, %v1230
    %v1233 = vmul.f32 %v1227, %v1231
    %v1234 = vrcp.pop %v1206
    %v1235 = vrcp.pop %v1207
    %v1236 = vmul.f32 %v1206, %v1234
    %v1237 = vmul.f32 %v1207, %v1235
    %v1238 = vsub.f32 2.0, %v1236
    %v1239 = vsub.f32 2.0, %v1237
    %v1240 = vmul.f32 %v1234, %v1238
    %v1241 = vmul.f32 %v1235, %v1239
    %v1242 = vmul.f32 %v1214, %v1240
    %v1243 = vmul.f32 %v1215, %v1241
    %v1244 = vadd.f32 %v1242, 1.0
    %v1245 = vadd.f32 %v1243, 1.0
    %v1246 = vand.u32 2147483647, %v1244
    %v1247 = vand.u32 2147483647, %v1245
    %vm1248 = vcmp.lt.f32.partialorder %v1246, 1e-30
    %vm1249 = vcmp.lt.f32.partialorder %v1247, 1e-30
    %v1250 = vsel %vm1248, 1e-30, %v1244
    %v1251 = vsel %vm1249, 1e-30, %v1245
    %v1252 = vmul.f32 %v1210, %v1232
    %v1253 = vmul.f32 %v1211, %v1233
    %v1254 = vmul.f32 %v1252, %v1250
    %v1255 = vmul.f32 %v1253, %v1251
    %v1256 = vsel %vm29, -0.278621, -0.27881694
    %v1257 = vsel %vm30, -0.278621, -0.27881694
    %v1258 = vmul.f32 %v1256, %v51
    %v1259 = vmul.f32 %v1257, %v52
    %v1260 = vmul.f32 %v1258, %v1232
    %v1261 = vmul.f32 %v1259, %v1233
    %v1262 = vadd.f32 %v1260, 1.0
    %v1263 = vadd.f32 %v1261, 1.0
    %v1264 = vand.u32 2147483647, %v1262
    %v1265 = vand.u32 2147483647, %v1263
    %vm1266 = vcmp.lt.f32.partialorder %v1264, 1e-30
    %vm1267 = vcmp.lt.f32.partialorder %v1265, 1e-30
    %v1268 = vsel %vm1266, 1e-30, %v1262
    %v1269 = vsel %vm1267, 1e-30, %v1263
    %v1270 = vrcp.pop %v1268
    %v1271 = vrcp.pop %v1269
    %v1272 = vmul.f32 %v1268, %v1270
    %v1273 = vmul.f32 %v1269, %v1271
    %v1274 = vsub.f32 2.0, %v1272
    %v1275 = vsub.f32 2.0, %v1273
    %v1276 = vmul.f32 %v1270, %v1274
    %v1277 = vmul.f32 %v1271, %v1275
    %v1278 = vrcp.pop %v1250
    %v1279 = vrcp.pop %v1251
    %v1280 = vmul.f32 %v1250, %v1278
    %v1281 = vmul.f32 %v1251, %v1279
    %v1282 = vsub.f32 2.0, %v1280
    %v1283 = vsub.f32 2.0, %v1281
    %v1284 = vmul.f32 %v1278, %v1282
    %v1285 = vmul.f32 %v1279, %v1283
    %v1286 = vmul.f32 %v1258, %v1284
    %v1287 = vmul.f32 %v1259, %v1285
    %v1288 = vadd.f32 %v1286, 1.0
    %v1289 = vadd.f32 %v1287, 1.0
    %v1290 = vand.u32 2147483647, %v1288
    %v1291 = vand.u32 2147483647, %v1289
    %vm1292 = vcmp.lt.f32.partialorder %v1290, 1e-30
    %vm1293 = vcmp.lt.f32.partialorder %v1291, 1e-30
    %v1294 = vsel %vm1292, 1e-30, %v1288
    %v1295 = vsel %vm1293, 1e-30, %v1289
    %v1296 = vmul.f32 %v1254, %v1276
    %v1297 = vmul.f32 %v1255, %v1277
    %v1298 = vmul.f32 %v1296, %v1294
    %v1299 = vmul.f32 %v1297, %v1295
    %v1300 = vsel %vm29, -0.22357029, -0.22280478
    %v1301 = vsel %vm30, -0.22357029, -0.22280478
    %v1302 = vmul.f32 %v1300, %v51
    %v1303 = vmul.f32 %v1301, %v52
    %v1304 = vmul.f32 %v1302, %v1276
    %v1305 = vmul.f32 %v1303, %v1277
    %v1306 = vadd.f32 %v1304, 1.0
    %v1307 = vadd.f32 %v1305, 1.0
    %v1308 = vand.u32 2147483647, %v1306
    %v1309 = vand.u32 2147483647, %v1307
    %vm1310 = vcmp.lt.f32.partialorder %v1308, 1e-30
    %vm1311 = vcmp.lt.f32.partialorder %v1309, 1e-30
    %v1312 = vsel %vm1310, 1e-30, %v1306
    %v1313 = vsel %vm1311, 1e-30, %v1307
    %v1314 = vrcp.pop %v1312
    %v1315 = vrcp.pop %v1313
    %v1316 = vmul.f32 %v1312, %v1314
    %v1317 = vmul.f32 %v1313, %v1315
    %v1318 = vsub.f32 2.0, %v1316
    %v1319 = vsub.f32 2.0, %v1317
    %v1320 = vmul.f32 %v1314, %v1318
    %v1321 = vmul.f32 %v1315, %v1319
    %v1322 = vrcp.pop %v1294
    %v1323 = vrcp.pop %v1295
    %v1324 = vmul.f32 %v1294, %v1322
    %v1325 = vmul.f32 %v1295, %v1323
    %v1326 = vsub.f32 2.0, %v1324
    %v1327 = vsub.f32 2.0, %v1325
    %v1328 = vmul.f32 %v1322, %v1326
    %v1329 = vmul.f32 %v1323, %v1327
    %v1330 = vmul.f32 %v1302, %v1328
    %v1331 = vmul.f32 %v1303, %v1329
    %v1332 = vadd.f32 %v1330, 1.0
    %v1333 = vadd.f32 %v1331, 1.0
    %v1334 = vand.u32 2147483647, %v1332
    %v1335 = vand.u32 2147483647, %v1333
    %vm1336 = vcmp.lt.f32.partialorder %v1334, 1e-30
    %vm1337 = vcmp.lt.f32.partialorder %v1335, 1e-30
    %v1338 = vsel %vm1336, 1e-30, %v1332
    %v1339 = vsel %vm1337, 1e-30, %v1333
    %v1340 = vmul.f32 %v1298, %v1320
    %v1341 = vmul.f32 %v1299, %v1321
    %v1342 = vmul.f32 %v1340, %v1338
    %v1343 = vmul.f32 %v1341, %v1339
    %v1344 = vsel %vm29, -0.2767838, -0.27695465
    %v1345 = vsel %vm30, -0.2767838, -0.27695465
    %v1346 = vmul.f32 %v1344, %v51
    %v1347 = vmul.f32 %v1345, %v52
    %v1348 = vmul.f32 %v1346, %v1320
    %v1349 = vmul.f32 %v1347, %v1321
    %v1350 = vadd.f32 %v1348, 1.0
    %v1351 = vadd.f32 %v1349, 1.0
    %v1352 = vand.u32 2147483647, %v1350
    %v1353 = vand.u32 2147483647, %v1351
    %vm1354 = vcmp.lt.f32.partialorder %v1352, 1e-30
    %vm1355 = vcmp.lt.f32.partialorder %v1353, 1e-30
    %v1356 = vsel %vm1354, 1e-30, %v1350
    %v1357 = vsel %vm1355, 1e-30, %v1351
    %v1358 = vrcp.pop %v1356
    %v1359 = vrcp.pop %v1357
    %v1360 = vmul.f32 %v1356, %v1358
    %v1361 = vmul.f32 %v1357, %v1359
    %v1362 = vsub.f32 2.0, %v1360
    %v1363 = vsub.f32 2.0, %v1361
    %v1364 = vmul.f32 %v1358, %v1362
    %v1365 = vmul.f32 %v1359, %v1363
    %v1366 = vrcp.pop %v1338
    %v1367 = vrcp.pop %v1339
    %v1368 = vmul.f32 %v1338, %v1366
    %v1369 = vmul.f32 %v1339, %v1367
    %v1370 = vsub.f32 2.0, %v1368
    %v1371 = vsub.f32 2.0, %v1369
    %v1372 = vmul.f32 %v1366, %v1370
    %v1373 = vmul.f32 %v1367, %v1371
    %v1374 = vmul.f32 %v1346, %v1372
    %v1375 = vmul.f32 %v1347, %v1373
    %v1376 = vadd.f32 %v1374, 1.0
    %v1377 = vadd.f32 %v1375, 1.0
    %v1378 = vand.u32 2147483647, %v1376
    %v1379 = vand.u32 2147483647, %v1377
    %vm1380 = vcmp.lt.f32.partialorder %v1378, 1e-30
    %vm1381 = vcmp.lt.f32.partialorder %v1379, 1e-30
    %v1382 = vsel %vm1380, 1e-30, %v1376
    %v1383 = vsel %vm1381, 1e-30, %v1377
    %v1384 = vmul.f32 %v1342, %v1364
    %v1385 = vmul.f32 %v1343, %v1365
    %v1386 = vmul.f32 %v1384, %v1382
    %v1387 = vmul.f32 %v1385, %v1383
    %v1388 = vmul.f32 %v48, %v1386
    %v1389 = vmul.f32 %v50, %v1387
    %v1390 = vsel %vm29, 0.7408182, 1.2214028
    %v1391 = vsel %vm30, 0.7408182, 1.2214028
    %v1392 = vmul.f32 %v1388, %v1390
    %v1393 = vmul.f32 %v1389, %v1391
    %v1394 = vsub.f32 1.0, %v1392
    %v1395 = vsub.f32 1.0, %v1393
    %v1396 = vsel %vm29, %v1392, %v1394
    %v1397 = vsel %vm30, %v1393, %v1395
    %vm1398 = vcmp.le.f32.partialorder %v21, 0.0
    %vm1399 = vcmp.le.f32.partialorder %v22, 0.0
    %v1400 = vsel %vm1398, 0.0, %v1396
    %v1401 = vsel %vm1399, 0.0, %v1397
    %vm1402 = vcmp.ge.f32.partialorder %v21, 1.0
    %vm1403 = vcmp.ge.f32.partialorder %v22, 1.0
    %v1404 = vsel %vm1402, 1.0, %v1400
    %v1405 = vsel %vm1403, 1.0, %v1401
    %v1406 = vmul.f32 %v1404, 1.6487212
    %v1407 = vmul.f32 %v1405, 1.6487212
    %1408 = vst [vmem:[#allocation5] sm:$0xff] %v1406
    %1409 = vst [vmem:[#allocation5 + $0x8] sm:$0xff] %v1407
    // Predicated region
    $region10: #{tpu_custom_call.1} parent=1 // pred_check
      _
    $region11: #{tpu_custom_call.1} parent=1 // pred_check_branch
      %1411 = sbr.rel (0) target = $region13
    $region12: #{tpu_custom_call.1} parent=1 // pred_region
      %s1413 = ssub.s32 256, 256
      %1414 = vsyncadd [#allocation4], %s1413
      %s1416 = sshll.u32 [#allocation5], 4
      %s1417 = int_to_ptr.vmem [resolvable:$true] %s1416
      %1419 = dma.vmem_to_hbm [thread:$0]  %s1417, 256, %s1, [#allocation4]
    $region13: #{tpu_custom_call.1} parent=1 // pred_fallthru
      _
    // Predicated region
    $region14: #{tpu_custom_call.1} parent=1 // pred_check
      _
    $region15: #{tpu_custom_call.1} parent=1 // pred_check_branch
      %1421 = sbr.rel (0) target = $region17
    $region16: #{tpu_custom_call.1} parent=1 // pred_region
      %1422 = dma.done [#allocation4], 256
    $region17: #{tpu_custom_call.1} parent=1 // pred_fallthru
      _
    %1423 = vsyncpa [#allocation3], 1
    %1424 = vsyncpa [#allocation4], 1

</llo_original>
